<compile_context>
chip_gen: v7x
topology: tpu7x:2x2x1
jax: 0.10.0
libtpu: 0.0.40
codegen_flags: <defaults>
</compile_context>

<pallas_src>
import functools

import jax
import jax.numpy as jnp
from jax.experimental import pallas as pl
from jax.experimental.pallas import tpu as pltpu


def _coupling_kernel(mask_type, reverse,
                     slab_ref,
                     w1_ref, b1_ref, w23_ref, b23_ref, w4_ref, b4_ref,
                     out_ref):
    f32 = jnp.float32
    bf16 = jnp.bfloat16
    H = w23_ref.shape[-1]

    slab = slab_ref[...]                 # [TB, 4] f32: [x_masked, c0, c1, x_t]
    cin = slab[:, 0:3]                   # [TB, 3]  network input
    x_masked = slab[:, 0:1]              # [TB, 1]
    x_transform = slab[:, 3:4]           # [TB, 1]

    def leaky(h):
        # LeakyReLU(0.2) == max(h, 0.2*h); one VPU op instead of cmp+select.
        return jnp.maximum(h, 0.2 * h)

    # Fused layer 1: both MLPs share the same input -> one [TB,3]@[3,2H] matmul.
    h1 = jnp.dot(cin.astype(bf16), w1_ref[...],
                 preferred_element_type=f32) + b1_ref[...]
    h1 = leaky(h1)                                     # [TB, 2H] f32
    hs, ht = h1[:, :H], h1[:, H:]                      # scale-net / trans-net

    def hidden_layer(h, li):
        h = jnp.dot(h.astype(bf16), w23_ref[li],
                    preferred_element_type=f32) + b23_ref[li:li + 1, :]
        return leaky(h)

    hs = hidden_layer(hidden_layer(hs, 0), 1)          # sW2, sW3
    ht = hidden_layer(hidden_layer(ht, 2), 3)          # tW2, tW3

    # Final N=1 projections: VPU multiply + lane reduction (skip the MXU).
    w4 = w4_ref[...]                                   # [2, H] f32
    b4 = b4_ref[...]                                   # [1, 2] f32
    s_pre = jnp.sum(hs * w4[0:1, :], axis=-1, keepdims=True) + b4[:, 0:1]
    translation = jnp.sum(ht * w4[1:2, :], axis=-1, keepdims=True) + b4[:, 1:2]

    scale = jnp.tanh(s_pre) * 2.0                      # [TB, 1]

    if reverse:
        y = (x_transform - translation) * jnp.exp(-scale)
        logdet = -scale
    else:
        y = x_transform * jnp.exp(scale) + translation
        logdet = scale

    # Column slice stores (no 3-lane concat temp).
    if mask_type == 0:
        out_ref[:, 0:1] = x_masked.astype(out_ref.dtype)
        out_ref[:, 1:2] = y.astype(out_ref.dtype)
    else:
        out_ref[:, 0:1] = y.astype(out_ref.dtype)
        out_ref[:, 1:2] = x_masked.astype(out_ref.dtype)
    out_ref[:, 2:3] = logdet.astype(out_ref.dtype)


def pack_params(params):
    """Pack the 16 per-layer tensors into 6 slabs (do once, not per call)."""
    bf16 = jnp.bfloat16
    f32 = jnp.float32
    return dict(
        W1=jnp.concatenate([params["sW1"], params["tW1"]], axis=1).astype(bf16),   # [3, 2H]
        B1=jnp.concatenate([params["sb1"], params["tb1"]], axis=1).astype(f32),    # [1, 2H]
        W23=jnp.stack([params["sW2"], params["sW3"],
                       params["tW2"], params["tW3"]], axis=0).astype(bf16),        # [4, H, H]
        B23=jnp.concatenate([params["sb2"], params["sb3"],
                             params["tb2"], params["tb3"]], axis=0).astype(f32),   # [4, H]
        W4=jnp.concatenate([params["sW4"], params["tW4"]], axis=1).T.astype(f32),  # [2, H]
        B4=jnp.concatenate([params["sb4"], params["tb4"]], axis=1).astype(f32),    # [1, 2]
    )


def _pick_tile_b(B):
    """Large tile to amortize the ~0.35us per-grid-step overhead; halve while
    the grid would collapse below 2 steps (keeps both v7x TensorCores fed)."""
    tile_b = 1024
    while tile_b > 128 and B <= tile_b:
        tile_b //= 2
    return tile_b


def conditional_coupling_forward(x, condition, packed, *,
                                 mask_type=0, reverse=False, tile_b=None):
    """x: [B,2] f32, condition: [B,2] f32, packed: output of pack_params."""
    B = x.shape[0]
    if tile_b is None:
        tile_b = _pick_tile_b(B)
    tile_b = max(8, (tile_b // 8) * 8)          # sublane-aligned batch tile
    grid_b = pl.cdiv(B, tile_b)
    Bp = grid_b * tile_b

    # One input slab per row: [x_masked, cond0, cond1, x_transform]
    # (mask_type is static -> pick columns in the wrapper, not in the kernel).
    if mask_type == 0:
        slab = jnp.concatenate([x[:, 0:1], condition, x[:, 1:2]], axis=1)
    else:
        slab = jnp.concatenate([x[:, 1:2], condition, x[:, 0:1]], axis=1)
    if Bp != B:
        slab = jnp.pad(slab, ((0, Bp - B), (0, 0)))

    kernel = functools.partial(_coupling_kernel, mask_type, reverse)

    def resident(shape):
        # Parameters: same block every grid step -> DMA'd once, stay in VMEM.
        return pl.BlockSpec(shape, lambda i, _n=len(shape): (0,) * _n)

    out = pl.pallas_call(
        kernel,
        out_shape=jax.ShapeDtypeStruct((Bp, 3), jnp.float32),
        grid_spec=pltpu.PrefetchScalarGridSpec(
            num_scalar_prefetch=0,
            grid=(grid_b,),
            in_specs=[
                pl.BlockSpec((tile_b, 4), lambda i: (i, 0)),   # input slab
                resident(packed["W1"].shape),
                resident(packed["B1"].shape),
                resident(packed["W23"].shape),
                resident(packed["B23"].shape),
                resident(packed["W4"].shape),
                resident(packed["B4"].shape),
            ],
            out_specs=pl.BlockSpec((tile_b, 3), lambda i: (i, 0)),
        ),
        compiler_params=pltpu.CompilerParams(
            dimension_semantics=("parallel",),
            # 48 MiB: above the 16 MiB (v5e) / 32 MiB (v6e, v7x) default scoped
            # VMEM limits so tile_b=1024 fits; below v7x's 64 MiB physical VMEM.
            vmem_limit_bytes=48 * 1024 * 1024,
        ),
    )(slab, packed["W1"], packed["B1"], packed["W23"],
      packed["B23"], packed["W4"], packed["B4"])

    out = out[:B]
    return out[:, 0:2], out[:, 2]       # x_new [B,2], log_det [B]


def init_params(key, condition_input_dim=3, hidden_dim=256):
    """Deterministic synthetic init; Linear weights stored as [in, out]."""
    dims = [(condition_input_dim, hidden_dim),
            (hidden_dim, hidden_dim),
            (hidden_dim, hidden_dim),
            (hidden_dim, 1)]
    params = {}
    for net in ("s", "t"):
        for i, (din, dout) in enumerate(dims, start=1):
            key, kw, kb = jax.random.split(key, 3)
            bound = 1.0 / jnp.sqrt(din)
            params[f"{net}W{i}"] = jax.random.uniform(
                kw, (din, dout), jnp.float32, -bound, bound)
            params[f"{net}b{i}"] = jax.random.uniform(
                kb, (1, dout), jnp.float32, -bound, bound)
    return params


def _reference_forward_bf16(x, condition, params, mask_type=0, reverse=False):
    """Pure-JAX reference mirroring the module, with the same bf16 weight /
    operand quantization + f32 accumulation scheme as the kernel."""
    bf16 = jnp.bfloat16
    if mask_type == 0:
        x_masked, x_transform = x[:, 0:1], x[:, 1:2]
    else:
        x_masked, x_transform = x[:, 1:2], x[:, 0:1]
    cin = jnp.concatenate([x_masked, condition], axis=1)

    def mlp(prefix):
        h = cin
        for i in range(1, 4):
            w = params[f"{prefix}W{i}"].astype(bf16)
            h = jnp.dot(h.astype(bf16), w,
                        preferred_element_type=jnp.float32) + params[f"{prefix}b{i}"]
            h = jnp.where(h > 0, h, 0.2 * h)
        w4 = params[f"{prefix}W4"][:, 0]
        return jnp.sum(h * w4[None, :], axis=-1, keepdims=True) + params[f"{prefix}b4"]

    scale = jnp.tanh(mlp("s")) * 2.0
    translation = mlp("t")
    if reverse:
        y = (x_transform - translation) * jnp.exp(-scale)
        log_det = -jnp.sum(scale, axis=1)
    else:
        y = x_transform * jnp.exp(scale) + translation
        log_det = jnp.sum(scale, axis=1)
    if mask_type == 0:
        x_new = jnp.concatenate([x_masked, y], axis=1)
    else:
        x_new = jnp.concatenate([y, x_masked], axis=1)
    return x_new, log_det


if __name__ == "__main__":
    key = jax.random.PRNGKey(0)
    k_x, k_c, k_p = jax.random.split(key, 3)

    B = 512                    # small demo batch (wrapper pads/tiles any B)
    hidden_dim = 128           # small demo hidden size (module default is 256)

    x = jax.random.normal(k_x, (B, 2), jnp.float32)           # joint angles
    condition = jax.random.normal(k_c, (B, 2), jnp.float32)   # end-effector pos
    params = init_params(k_p, condition_input_dim=3, hidden_dim=hidden_dim)
    packed = pack_params(params)

    # forward pass (tile_b auto: 256 here -> grid of 2 parallel steps)
    x_new, log_det = conditional_coupling_forward(
        x, condition, packed, mask_type=0, reverse=False)
    jax.block_until_ready((x_new, log_det))

    # correctness vs pure-JAX reference using the same bf16 quantization
    x_ref, ld_ref = _reference_forward_bf16(x, condition, params, 0, False)
    assert jnp.allclose(x_new, x_ref, rtol=5e-3, atol=5e-3), \
        float(jnp.max(jnp.abs(x_new - x_ref)))
    assert jnp.allclose(log_det, ld_ref, rtol=5e-3, atol=5e-3), \
        float(jnp.max(jnp.abs(log_det - ld_ref)))

    # invertibility: reverse(forward(x)) == x, log_det flips sign
    x_back, ld_back = conditional_coupling_forward(
        x_new, condition, packed, mask_type=0, reverse=True)
    jax.block_until_ready((x_back, ld_back))
    assert jnp.allclose(x_back, x, rtol=1e-4, atol=1e-4)
    assert jnp.allclose(ld_back, -log_det, rtol=1e-5, atol=1e-5)

    # also exercise the other static mask
    x_new1, ld1 = conditional_coupling_forward(
        x, condition, packed, mask_type=1, reverse=False)
    x_ref1, ld_ref1 = _reference_forward_bf16(x, condition, params, 1, False)
    jax.block_until_ready((x_new1, ld1))
    assert jnp.allclose(x_new1, x_ref1, rtol=5e-3, atol=5e-3)
    assert jnp.allclose(ld1, ld_ref1, rtol=5e-3, atol=5e-3)

    print("KERNEL_OK")
</pallas_src>

<mosaic_0001>
module attributes {stable_mosaic.version = 11 : i64} {
  func.func @_coupling_kernel(%arg0: i32, %arg1: memref<256x4xf32, #tpu.memory_space<vmem>>, %arg2: memref<3x256xbf16, #tpu.memory_space<vmem>>, %arg3: memref<1x256xf32, #tpu.memory_space<vmem>>, %arg4: memref<4x128x128xbf16, #tpu.memory_space<vmem>>, %arg5: memref<4x128xf32, #tpu.memory_space<vmem>>, %arg6: memref<2x128xf32, #tpu.memory_space<vmem>>, %arg7: memref<1x2xf32, #tpu.memory_space<vmem>>, %arg8: memref<256x3xf32, #tpu.memory_space<vmem>>) attributes {dimension_semantics = [#tpu.dimension_semantics<parallel>], iteration_bounds = array<i64: 2>, scalar_prefetch = 0 : i64, scratch_operands = 0 : i64, tpu.core_type = #tpu.core_type<tc>, window_params = [{transform_indices = @transform_0, window_bounds = array<i64: 256, 4>}, {pipeline_mode = #tpu.pipeline_mode<synchronous>, transform_indices = @transform_1, window_bounds = array<i64: 3, 256>}, {pipeline_mode = #tpu.pipeline_mode<synchronous>, transform_indices = @transform_2, window_bounds = array<i64: 1, 256>}, {pipeline_mode = #tpu.pipeline_mode<synchronous>, transform_indices = @transform_3, window_bounds = array<i64: 4, 128, 128>}, {pipeline_mode = #tpu.pipeline_mode<synchronous>, transform_indices = @transform_4, window_bounds = array<i64: 4, 128>}, {pipeline_mode = #tpu.pipeline_mode<synchronous>, transform_indices = @transform_5, window_bounds = array<i64: 2, 128>}, {pipeline_mode = #tpu.pipeline_mode<synchronous>, transform_indices = @transform_6, window_bounds = array<i64: 1, 2>}, {transform_indices = @transform_7, window_bounds = array<i64: 256, 3>}]} {
    %c0 = arith.constant 0 : index
    %c0_0 = arith.constant 0 : index
    %0 = vector.load %arg1[%c0, %c0_0] : memref<256x4xf32, #tpu.memory_space<vmem>>, vector<256x4xf32>
    %1 = vector.extract_strided_slice %0 {offsets = [0, 0], sizes = [256, 3], strides = [1, 1]} : vector<256x4xf32> to vector<256x3xf32>
    %2 = vector.extract_strided_slice %0 {offsets = [0, 0], sizes = [256, 1], strides = [1, 1]} : vector<256x4xf32> to vector<256x1xf32>
    %3 = vector.extract_strided_slice %0 {offsets = [0, 3], sizes = [256, 1], strides = [1, 1]} : vector<256x4xf32> to vector<256x1xf32>
    %4 = arith.truncf %1 : vector<256x3xf32> to vector<256x3xbf16>
    %c0_1 = arith.constant 0 : index
    %c0_2 = arith.constant 0 : index
    %5 = vector.load %arg2[%c0_1, %c0_2] : memref<3x256xbf16, #tpu.memory_space<vmem>>, vector<3x256xbf16>
    %cst = arith.constant dense<0.000000e+00> : vector<256x256xf32>
    %6 = tpu.matmul %4, %5, %cst {dimension_numbers = #tpu.dot_dimension_numbers<[1], [0], [0], [1], [0, 0, 1, 1], [], []>} : vector<256x3xbf16>, vector<3x256xbf16>, vector<256x256xf32> -> vector<256x256xf32>
    %c0_3 = arith.constant 0 : index
    %c0_4 = arith.constant 0 : index
    %7 = vector.load %arg3[%c0_3, %c0_4] : memref<1x256xf32, #tpu.memory_space<vmem>>, vector<1x256xf32>
    %8 = vector.broadcast %7 : vector<1x256xf32> to vector<256x256xf32>
    %9 = arith.addf %6, %8 : vector<256x256xf32>
    %cst_5 = arith.constant 2.000000e-01 : f32
    %10 = vector.broadcast %cst_5 : f32 to vector<256x256xf32>
    %11 = arith.mulf %10, %9 : vector<256x256xf32>
    %12 = arith.maximumf %9, %11 : vector<256x256xf32>
    %13 = vector.extract_strided_slice %12 {offsets = [0, 0], sizes = [256, 128], strides = [1, 1]} : vector<256x256xf32> to vector<256x128xf32>
    %14 = vector.extract_strided_slice %12 {offsets = [0, 128], sizes = [256, 128], strides = [1, 1]} : vector<256x256xf32> to vector<256x128xf32>
    %15 = arith.truncf %13 : vector<256x128xf32> to vector<256x128xbf16>
    %c0_6 = arith.constant 0 : index
    %c0_7 = arith.constant 0 : index
    %c0_8 = arith.constant 0 : index
    %16 = vector.load %arg4[%c0_6, %c0_7, %c0_8] : memref<4x128x128xbf16, #tpu.memory_space<vmem>>, vector<1x128x128xbf16>
    %17 = vector.shape_cast %16 : vector<1x128x128xbf16> to vector<128x128xbf16>
    %cst_9 = arith.constant dense<0.000000e+00> : vector<256x128xf32>
    %18 = tpu.matmul %15, %17, %cst_9 {dimension_numbers = #tpu.dot_dimension_numbers<[1], [0], [0], [1], [0, 0, 1, 1], [], []>} : vector<256x128xbf16>, vector<128x128xbf16>, vector<256x128xf32> -> vector<256x128xf32>
    %c0_10 = arith.constant 0 : index
    %c0_11 = arith.constant 0 : index
    %19 = vector.load %arg5[%c0_10, %c0_11] : memref<4x128xf32, #tpu.memory_space<vmem>>, vector<1x128xf32>
    %20 = vector.broadcast %19 : vector<1x128xf32> to vector<256x128xf32>
    %21 = arith.addf %18, %20 : vector<256x128xf32>
    %cst_12 = arith.constant 2.000000e-01 : f32
    %22 = vector.broadcast %cst_12 : f32 to vector<256x128xf32>
    %23 = arith.mulf %22, %21 : vector<256x128xf32>
    %24 = arith.maximumf %21, %23 : vector<256x128xf32>
    %25 = arith.truncf %24 : vector<256x128xf32> to vector<256x128xbf16>
    %c1 = arith.constant 1 : index
    %c0_13 = arith.constant 0 : index
    %c0_14 = arith.constant 0 : index
    %26 = vector.load %arg4[%c1, %c0_13, %c0_14] : memref<4x128x128xbf16, #tpu.memory_space<vmem>>, vector<1x128x128xbf16>
    %27 = vector.shape_cast %26 : vector<1x128x128xbf16> to vector<128x128xbf16>
    %cst_15 = arith.constant dense<0.000000e+00> : vector<256x128xf32>
    %28 = tpu.matmul %25, %27, %cst_15 {dimension_numbers = #tpu.dot_dimension_numbers<[1], [0], [0], [1], [0, 0, 1, 1], [], []>} : vector<256x128xbf16>, vector<128x128xbf16>, vector<256x128xf32> -> vector<256x128xf32>
    %c1_16 = arith.constant 1 : index
    %c0_17 = arith.constant 0 : index
    %29 = vector.load %arg5[%c1_16, %c0_17] : memref<4x128xf32, #tpu.memory_space<vmem>>, vector<1x128xf32>
    %30 = vector.broadcast %29 : vector<1x128xf32> to vector<256x128xf32>
    %31 = arith.addf %28, %30 : vector<256x128xf32>
    %cst_18 = arith.constant 2.000000e-01 : f32
    %32 = vector.broadcast %cst_18 : f32 to vector<256x128xf32>
    %33 = arith.mulf %32, %31 : vector<256x128xf32>
    %34 = arith.maximumf %31, %33 : vector<256x128xf32>
    %35 = arith.truncf %14 : vector<256x128xf32> to vector<256x128xbf16>
    %c2 = arith.constant 2 : index
    %c0_19 = arith.constant 0 : index
    %c0_20 = arith.constant 0 : index
    %36 = vector.load %arg4[%c2, %c0_19, %c0_20] : memref<4x128x128xbf16, #tpu.memory_space<vmem>>, vector<1x128x128xbf16>
    %37 = vector.shape_cast %36 : vector<1x128x128xbf16> to vector<128x128xbf16>
    %cst_21 = arith.constant dense<0.000000e+00> : vector<256x128xf32>
    %38 = tpu.matmul %35, %37, %cst_21 {dimension_numbers = #tpu.dot_dimension_numbers<[1], [0], [0], [1], [0, 0, 1, 1], [], []>} : vector<256x128xbf16>, vector<128x128xbf16>, vector<256x128xf32> -> vector<256x128xf32>
    %c2_22 = arith.constant 2 : index
    %c0_23 = arith.constant 0 : index
    %39 = vector.load %arg5[%c2_22, %c0_23] : memref<4x128xf32, #tpu.memory_space<vmem>>, vector<1x128xf32>
    %40 = vector.broadcast %39 : vector<1x128xf32> to vector<256x128xf32>
    %41 = arith.addf %38, %40 : vector<256x128xf32>
    %cst_24 = arith.constant 2.000000e-01 : f32
    %42 = vector.broadcast %cst_24 : f32 to vector<256x128xf32>
    %43 = arith.mulf %42, %41 : vector<256x128xf32>
    %44 = arith.maximumf %41, %43 : vector<256x128xf32>
    %45 = arith.truncf %44 : vector<256x128xf32> to vector<256x128xbf16>
    %c3 = arith.constant 3 : index
    %c0_25 = arith.constant 0 : index
    %c0_26 = arith.constant 0 : index
    %46 = vector.load %arg4[%c3, %c0_25, %c0_26] : memref<4x128x128xbf16, #tpu.memory_space<vmem>>, vector<1x128x128xbf16>
    %47 = vector.shape_cast %46 : vector<1x128x128xbf16> to vector<128x128xbf16>
    %cst_27 = arith.constant dense<0.000000e+00> : vector<256x128xf32>
    %48 = tpu.matmul %45, %47, %cst_27 {dimension_numbers = #tpu.dot_dimension_numbers<[1], [0], [0], [1], [0, 0, 1, 1], [], []>} : vector<256x128xbf16>, vector<128x128xbf16>, vector<256x128xf32> -> vector<256x128xf32>
    %c3_28 = arith.constant 3 : index
    %c0_29 = arith.constant 0 : index
    %49 = vector.load %arg5[%c3_28, %c0_29] : memref<4x128xf32, #tpu.memory_space<vmem>>, vector<1x128xf32>
    %50 = vector.broadcast %49 : vector<1x128xf32> to vector<256x128xf32>
    %51 = arith.addf %48, %50 : vector<256x128xf32>
    %cst_30 = arith.constant 2.000000e-01 : f32
    %52 = vector.broadcast %cst_30 : f32 to vector<256x128xf32>
    %53 = arith.mulf %52, %51 : vector<256x128xf32>
    %54 = arith.maximumf %51, %53 : vector<256x128xf32>
    %c0_31 = arith.constant 0 : index
    %c0_32 = arith.constant 0 : index
    %55 = vector.load %arg6[%c0_31, %c0_32] : memref<2x128xf32, #tpu.memory_space<vmem>>, vector<2x128xf32>
    %c0_33 = arith.constant 0 : index
    %c0_34 = arith.constant 0 : index
    %56 = vector.load %arg7[%c0_33, %c0_34] : memref<1x2xf32, #tpu.memory_space<vmem>>, vector<1x2xf32>
    %57 = vector.extract_strided_slice %55 {offsets = [0, 0], sizes = [1, 128], strides = [1, 1]} : vector<2x128xf32> to vector<1x128xf32>
    %58 = vector.broadcast %57 : vector<1x128xf32> to vector<256x128xf32>
    %59 = arith.mulf %34, %58 : vector<256x128xf32>
    %cst_35 = arith.constant dense<0.000000e+00> : vector<256xf32>
    %60 = vector.multi_reduction <add>, %59, %cst_35 [1] : vector<256x128xf32> to vector<256xf32>
    %61 = vector.shape_cast %60 : vector<256xf32> to vector<256x1xf32>
    %62 = vector.extract_strided_slice %56 {offsets = [0, 0], sizes = [1, 1], strides = [1, 1]} : vector<1x2xf32> to vector<1x1xf32>
    %63 = vector.broadcast %62 : vector<1x1xf32> to vector<256x1xf32>
    %64 = arith.addf %61, %63 : vector<256x1xf32>
    %65 = vector.extract_strided_slice %55 {offsets = [1, 0], sizes = [1, 128], strides = [1, 1]} : vector<2x128xf32> to vector<1x128xf32>
    %66 = vector.broadcast %65 : vector<1x128xf32> to vector<256x128xf32>
    %67 = arith.mulf %54, %66 : vector<256x128xf32>
    %cst_36 = arith.constant dense<0.000000e+00> : vector<256xf32>
    %68 = vector.multi_reduction <add>, %67, %cst_36 [1] : vector<256x128xf32> to vector<256xf32>
    %69 = vector.shape_cast %68 : vector<256xf32> to vector<256x1xf32>
    %70 = vector.extract_strided_slice %56 {offsets = [0, 1], sizes = [1, 1], strides = [1, 1]} : vector<1x2xf32> to vector<1x1xf32>
    %71 = vector.broadcast %70 : vector<1x1xf32> to vector<256x1xf32>
    %72 = arith.addf %69, %71 : vector<256x1xf32>
    %73 = math.tanh %64 : vector<256x1xf32>
    %cst_37 = arith.constant 2.000000e+00 : f32
    %74 = vector.broadcast %cst_37 : f32 to vector<256x1xf32>
    %75 = arith.mulf %73, %74 : vector<256x1xf32>
    %76 = math.exp %75 : vector<256x1xf32>
    %77 = arith.mulf %3, %76 : vector<256x1xf32>
    %78 = arith.addf %77, %72 : vector<256x1xf32>
    %c0_38 = arith.constant 0 : index
    %c0_39 = arith.constant 0 : index
    %79 = vector.load %arg8[%c0_38, %c0_39] : memref<256x3xf32, #tpu.memory_space<vmem>>, vector<256x1xf32>
    tpu.vector_store %arg8[%c0_38, %c0_39], %2 {strides = array<i32>} : memref<256x3xf32, #tpu.memory_space<vmem>>, vector<256x1xf32>,
    %c0_40 = arith.constant 0 : index
    %c1_41 = arith.constant 1 : index
    %80 = vector.load %arg8[%c0_40, %c1_41] : memref<256x3xf32, #tpu.memory_space<vmem>>, vector<256x1xf32>
    tpu.vector_store %arg8[%c0_40, %c1_41], %78 {strides = array<i32>} : memref<256x3xf32, #tpu.memory_space<vmem>>, vector<256x1xf32>,
    %c0_42 = arith.constant 0 : index
    %c2_43 = arith.constant 2 : index
    %81 = vector.load %arg8[%c0_42, %c2_43] : memref<256x3xf32, #tpu.memory_space<vmem>>, vector<256x1xf32>
    tpu.vector_store %arg8[%c0_42, %c2_43], %75 {strides = array<i32>} : memref<256x3xf32, #tpu.memory_space<vmem>>, vector<256x1xf32>,
    return
  }
  func.func @transform_0(%arg0: i32) -> (i32, i32) {
    %c0_i32 = arith.constant 0 : i32
    %c0_i32_0 = arith.constant 0 : i32
    return %arg0, %c0_i32 : i32, i32
  }
  func.func @transform_1(%arg0: i32) -> (i32, i32) {
    %c0_i32 = arith.constant 0 : i32
    %c0_i32_0 = arith.constant 0 : i32
    %c0_i32_1 = arith.constant 0 : i32
    return %c0_i32, %c0_i32_0 : i32, i32
  }
  func.func @transform_2(%arg0: i32) -> (i32, i32) {
    %c0_i32 = arith.constant 0 : i32
    %c0_i32_0 = arith.constant 0 : i32
    %c0_i32_1 = arith.constant 0 : i32
    return %c0_i32, %c0_i32_0 : i32, i32
  }
  func.func @transform_3(%arg0: i32) -> (i32, i32, i32) {
    %c0_i32 = arith.constant 0 : i32
    %c0_i32_0 = arith.constant 0 : i32
    %c0_i32_1 = arith.constant 0 : i32
    %c0_i32_2 = arith.constant 0 : i32
    return %c0_i32, %c0_i32_0, %c0_i32_1 : i32, i32, i32
  }
  func.func @transform_4(%arg0: i32) -> (i32, i32) {
    %c0_i32 = arith.constant 0 : i32
    %c0_i32_0 = arith.constant 0 : i32
    %c0_i32_1 = arith.constant 0 : i32
    return %c0_i32, %c0_i32_0 : i32, i32
  }
  func.func @transform_5(%arg0: i32) -> (i32, i32) {
    %c0_i32 = arith.constant 0 : i32
    %c0_i32_0 = arith.constant 0 : i32
    %c0_i32_1 = arith.constant 0 : i32
    return %c0_i32, %c0_i32_0 : i32, i32
  }
  func.func @transform_6(%arg0: i32) -> (i32, i32) {
    %c0_i32 = arith.constant 0 : i32
    %c0_i32_0 = arith.constant 0 : i32
    %c0_i32_1 = arith.constant 0 : i32
    return %c0_i32, %c0_i32_0 : i32, i32
  }
  func.func @transform_7(%arg0: i32) -> (i32, i32) {
    %c0_i32 = arith.constant 0 : i32
    %c0_i32_0 = arith.constant 0 : i32
    return %arg0, %c0_i32 : i32, i32
  }
}

</mosaic_0001>

<llo_original>
// kernel: tpu_custom_call.1
$region0: #{tpu_custom_call.1}
  #allocation0 [shape = 'u32[]', space=smem, size = 0x4, offset = 0x4, fixed_abs, tag = 'smem constant byte address 0x4 - core index']
  #allocation1 [shape = 'u32[144,128]{1,0:T(1,128)}', space=vmem, size = 0x12000, scoped, tag = 'internal scratch']
  %s0 = inlined_call_operand.vmem [shape: f32[512,4], index: 0, kind: input, shape index: {}]
  %s1 = inlined_call_operand.vmem [shape: bf16[3,256], index: 1, kind: input, shape index: {}]
  %s2 = inlined_call_operand.vmem [shape: f32[1,256], index: 2, kind: input, shape index: {}]
  %s3 = inlined_call_operand.vmem [shape: bf16[4,128,128], index: 3, kind: input, shape index: {}]
  %s4 = inlined_call_operand.vmem [shape: f32[4,128], index: 4, kind: input, shape index: {}]
  %s5 = inlined_call_operand.vmem [shape: f32[2,128], index: 5, kind: input, shape index: {}]
  %s6 = inlined_call_operand.vmem [shape: f32[1,2], index: 6, kind: input, shape index: {}]
  %s7 = inlined_call_operand.vmem [shape: f32[512,3], index: 7, kind: output, shape index: {}]
  %s8 = sld [smem:[#allocation0]]
  $region61: #{tpu_custom_call.1} parent=0
    _
  %s10 = ssub.s32 1, %s8
  %s11 = scalar_select 0, %s10, %s8
  loop: start=0, step=1, limit=4
  $region2: #{tpu_custom_call.1} parent=0 // loop_pre_header
    _
  $region3: #{tpu_custom_call.1} parent=0 // loop_header
    %s13 = sphi 0, %s17
    %p14 = scmp.ge.s32.totalorder %s13, 4
    %s23 = sphi 0, %s25
    %s26 = sphi 0, %s23
    %s27 = sphi 0, %s26
    %s43 = sphi 0, %s27
    %s47 = sphi 0, %s47
    %s49 = sphi 0, %s47
    %s50 = sphi 0, %s49
    %s64 = sphi 0, %s50
    %s68 = sphi 0, %s68
    %s70 = sphi 0, %s68
    %s71 = sphi 0, %s70
    %s85 = sphi 0, %s71
    %s89 = sphi 0, %s89
    %s91 = sphi 0, %s89
    %s92 = sphi 0, %s91
    %s106 = sphi 0, %s92
    %s110 = sphi 0, %s110
    %s112 = sphi 0, %s110
    %s113 = sphi 0, %s112
    %s127 = sphi 0, %s113
    %s131 = sphi 0, %s131
    %s133 = sphi 0, %s131
    %s134 = sphi 0, %s133
    %s148 = sphi 0, %s134
    %s152 = sphi 0, %s152
    %s154 = sphi 0, %s152
    %s155 = sphi 0, %s154
    %s169 = sphi 0, %s155
    %s175 = sphi 0, %s177
    %s178 = sphi 0, %s175
    %s179 = sphi 0, %s178
    %s195 = sphi 0, %s179
  $region4: #{tpu_custom_call.1} parent=0 // loop_header_branch
    %16 = sbr.rel (%p14) target = $region8
  $region5: #{tpu_custom_call.1} parent=0 // loop_body
    %s18 = ssub.s32 %s13, 1
    %s19 = ssub.s32 %s13, 2
    %s20 = sadd.s32 %s13, 1
    %s21 = ssub.s32 %s13, %s20
    %p22 = scmp.eq.s32.totalorder %s21, 0
    %s24 = sadd.s32 %s23, 1
    %s25 = scalar_select %p22, %s23, %s24
    %p28 = pneg %p22
    %p29 = scmp.eq.s32.totalorder %s13, 1
    %p30 = por %p28, %p29
    %p31 = scmp.ne.s32.totalorder %s23, %s26
    %p32 = scmp.eq.s32.totalorder %s13, 0
    %p33 = por %p31, %p32
    %p34 = scmp.ne.s32.totalorder %s23, %s26
    %p35 = scmp.eq.s32.totalorder %s18, 1
    %p36 = por %p34, %p35
    %p37 = scmp.ne.s32.totalorder %s26, %s27
    %p38 = scmp.eq.s32.totalorder %s18, 0
    %p39 = por %p37, %p38
    %p40 = scmp.ne.s32.totalorder %s26, %s27
    %p41 = scmp.eq.s32.totalorder %s19, 1
    %p42 = por %p40, %p41
    %p44 = scmp.ne.s32.totalorder %s27, %s43
    %p45 = scmp.eq.s32.totalorder %s19, 0
    %p46 = por %p44, %p45
    %s48 = sadd.s32 %s47, 1
    %p51 = scmp.eq.s32.totalorder %s13, 1
    %p52 = scmp.ne.s32.totalorder %s47, %s49
    %p53 = scmp.eq.s32.totalorder %s13, 0
    %p54 = por %p52, %p53
    %p55 = scmp.ne.s32.totalorder %s47, %s49
    %p56 = scmp.eq.s32.totalorder %s18, 1
    %p57 = por %p55, %p56
    %p58 = scmp.ne.s32.totalorder %s49, %s50
    %p59 = scmp.eq.s32.totalorder %s18, 0
    %p60 = por %p58, %p59
    %p61 = scmp.ne.s32.totalorder %s49, %s50
    %p62 = scmp.eq.s32.totalorder %s19, 1
    %p63 = por %p61, %p62
    %p65 = scmp.ne.s32.totalorder %s50, %s64
    %p66 = scmp.eq.s32.totalorder %s19, 0
    %p67 = por %p65, %p66
    %s69 = sadd.s32 %s68, 1
    %p72 = scmp.eq.s32.totalorder %s13, 1
    %p73 = scmp.ne.s32.totalorder %s68, %s70
    %p74 = scmp.eq.s32.totalorder %s13, 0
    %p75 = por %p73, %p74
    %p76 = scmp.ne.s32.totalorder %s68, %s70
    %p77 = scmp.eq.s32.totalorder %s18, 1
    %p78 = por %p76, %p77
    %p79 = scmp.ne.s32.totalorder %s70, %s71
    %p80 = scmp.eq.s32.totalorder %s18, 0
    %p81 = por %p79, %p80
    %p82 = scmp.ne.s32.totalorder %s70, %s71
    %p83 = scmp.eq.s32.totalorder %s19, 1
    %p84 = por %p82, %p83
    %p86 = scmp.ne.s32.totalorder %s71, %s85
    %p87 = scmp.eq.s32.totalorder %s19, 0
    %p88 = por %p86, %p87
    %s90 = sadd.s32 %s89, 1
    %p93 = scmp.eq.s32.totalorder %s13, 1
    %p94 = scmp.ne.s32.totalorder %s89, %s91
    %p95 = scmp.eq.s32.totalorder %s13, 0
    %p96 = por %p94, %p95
    %p97 = scmp.ne.s32.totalorder %s89, %s91
    %p98 = scmp.eq.s32.totalorder %s18, 1
    %p99 = por %p97, %p98
    %p100 = scmp.ne.s32.totalorder %s91, %s92
    %p101 = scmp.eq.s32.totalorder %s18, 0
    %p102 = por %p100, %p101
    %p103 = scmp.ne.s32.totalorder %s91, %s92
    %p104 = scmp.eq.s32.totalorder %s19, 1
    %p105 = por %p103, %p104
    %p107 = scmp.ne.s32.totalorder %s92, %s106
    %p108 = scmp.eq.s32.totalorder %s19, 0
    %p109 = por %p107, %p108
    %s111 = sadd.s32 %s110, 1
    %p114 = scmp.eq.s32.totalorder %s13, 1
    %p115 = scmp.ne.s32.totalorder %s110, %s112
    %p116 = scmp.eq.s32.totalorder %s13, 0
    %p117 = por %p115, %p116
    %p118 = scmp.ne.s32.totalorder %s110, %s112
    %p119 = scmp.eq.s32.totalorder %s18, 1
    %p120 = por %p118, %p119
    %p121 = scmp.ne.s32.totalorder %s112, %s113
    %p122 = scmp.eq.s32.totalorder %s18, 0
    %p123 = por %p121, %p122
    %p124 = scmp.ne.s32.totalorder %s112, %s113
    %p125 = scmp.eq.s32.totalorder %s19, 1
    %p126 = por %p124, %p125
    %p128 = scmp.ne.s32.totalorder %s113, %s127
    %p129 = scmp.eq.s32.totalorder %s19, 0
    %p130 = por %p128, %p129
    %s132 = sadd.s32 %s131, 1
    %p135 = scmp.eq.s32.totalorder %s13, 1
    %p136 = scmp.ne.s32.totalorder %s131, %s133
    %p137 = scmp.eq.s32.totalorder %s13, 0
    %p138 = por %p136, %p137
    %p139 = scmp.ne.s32.totalorder %s131, %s133
    %p140 = scmp.eq.s32.totalorder %s18, 1
    %p141 = por %p139, %p140
    %p142 = scmp.ne.s32.totalorder %s133, %s134
    %p143 = scmp.eq.s32.totalorder %s18, 0
    %p144 = por %p142, %p143
    %p145 = scmp.ne.s32.totalorder %s133, %s134
    %p146 = scmp.eq.s32.totalorder %s19, 1
    %p147 = por %p145, %p146
    %p149 = scmp.ne.s32.totalorder %s134, %s148
    %p150 = scmp.eq.s32.totalorder %s19, 0
    %p151 = por %p149, %p150
    %s153 = sadd.s32 %s152, 1
    %p156 = scmp.eq.s32.totalorder %s13, 1
    %p157 = scmp.ne.s32.totalorder %s152, %s154
    %p158 = scmp.eq.s32.totalorder %s13, 0
    %p159 = por %p157, %p158
    %p160 = scmp.ne.s32.totalorder %s152, %s154
    %p161 = scmp.eq.s32.totalorder %s18, 1
    %p162 = por %p160, %p161
    %p163 = scmp.ne.s32.totalorder %s154, %s155
    %p164 = scmp.eq.s32.totalorder %s18, 0
    %p165 = por %p163, %p164
    %p166 = scmp.ne.s32.totalorder %s154, %s155
    %p167 = scmp.eq.s32.totalorder %s19, 1
    %p168 = por %p166, %p167
    %p170 = scmp.ne.s32.totalorder %s155, %s169
    %p171 = scmp.eq.s32.totalorder %s19, 0
    %p172 = por %p170, %p171
    %s173 = ssub.s32 %s13, %s20
    %p174 = scmp.eq.s32.totalorder %s173, 0
    %s176 = sadd.s32 %s175, 1
    %s177 = scalar_select %p174, %s175, %s176
    %p180 = pneg %p174
    %p181 = scmp.eq.s32.totalorder %s13, 1
    %p182 = por %p180, %p181
    %p183 = scmp.ne.s32.totalorder %s175, %s178
    %p184 = scmp.eq.s32.totalorder %s13, 0
    %p185 = por %p183, %p184
    %p186 = scmp.ne.s32.totalorder %s175, %s178
    %p187 = scmp.eq.s32.totalorder %s18, 1
    %p188 = por %p186, %p187
    %p189 = scmp.ne.s32.totalorder %s178, %s179
    %p190 = scmp.eq.s32.totalorder %s18, 0
    %p191 = por %p189, %p190
    %p192 = scmp.ne.s32.totalorder %s178, %s179
    %p193 = scmp.eq.s32.totalorder %s19, 1
    %p194 = por %p192, %p193
    %p196 = scmp.ne.s32.totalorder %s179, %s195
    %p197 = scmp.eq.s32.totalorder %s19, 0
    %p198 = por %p196, %p197
    %p199 = scmp.le.s32.totalorder 1, %s13
    %p200 = scmp.lt.s32.totalorder %s13, 3
    %p201 = pnand %p199, %p200
    %p202 = pneg %p201
    // Predicated region
    $region9: #{tpu_custom_call.1} parent=5 // pred_check
      _
    $region10: #{tpu_custom_call.1} parent=5 // pred_check_branch
      %204 = sbr.rel (%p201) target = $region12
    $region11: #{tpu_custom_call.1} parent=5 // pred_region
      %s205 = ssub.s32 %s13, 1
      // Predicated region
      $region13: #{tpu_custom_call.1} parent=11 // pred_check
        %p206 = pneg %p60
      $region14: #{tpu_custom_call.1} parent=11 // pred_check_branch
        %208 = sbr.rel (%p206) target = $region16
      $region15: #{tpu_custom_call.1} parent=11 // pred_region
        _
      $region16: #{tpu_custom_call.1} parent=11 // pred_fallthru
        _
      // Predicated region
      $region17: #{tpu_custom_call.1} parent=11 // pred_check
        %p209 = pneg %p81
      $region18: #{tpu_custom_call.1} parent=11 // pred_check_branch
        %211 = sbr.rel (%p209) target = $region20
      $region19: #{tpu_custom_call.1} parent=11 // pred_region
        _
      $region20: #{tpu_custom_call.1} parent=11 // pred_fallthru
        _
      // Predicated region
      $region21: #{tpu_custom_call.1} parent=11 // pred_check
        %p212 = pneg %p102
      $region22: #{tpu_custom_call.1} parent=11 // pred_check_branch
        %214 = sbr.rel (%p212) target = $region24
      $region23: #{tpu_custom_call.1} parent=11 // pred_region
        _
      $region24: #{tpu_custom_call.1} parent=11 // pred_fallthru
        _
      // Predicated region
      $region25: #{tpu_custom_call.1} parent=11 // pred_check
        %p215 = pneg %p123
      $region26: #{tpu_custom_call.1} parent=11 // pred_check_branch
        %217 = sbr.rel (%p215) target = $region28
      $region27: #{tpu_custom_call.1} parent=11 // pred_region
        _
      $region28: #{tpu_custom_call.1} parent=11 // pred_fallthru
        _
      // Predicated region
      $region29: #{tpu_custom_call.1} parent=11 // pred_check
        %p218 = pneg %p144
      $region30: #{tpu_custom_call.1} parent=11 // pred_check_branch
        %220 = sbr.rel (%p218) target = $region32
      $region31: #{tpu_custom_call.1} parent=11 // pred_region
        _
      $region32: #{tpu_custom_call.1} parent=11 // pred_fallthru
        _
      // Predicated region
      $region33: #{tpu_custom_call.1} parent=11 // pred_check
        %p221 = pneg %p165
      $region34: #{tpu_custom_call.1} parent=11 // pred_check_branch
        %223 = sbr.rel (%p221) target = $region36
      $region35: #{tpu_custom_call.1} parent=11 // pred_region
        _
      $region36: #{tpu_custom_call.1} parent=11 // pred_fallthru
        _
    $region12: #{tpu_custom_call.1} parent=5 // pred_fallthru
      _
    %p224 = scmp.lt.s32.totalorder %s13, 2
    // Predicated region
    $region37: #{tpu_custom_call.1} parent=5 // pred_check
      %p225 = pneg %p224
    $region38: #{tpu_custom_call.1} parent=5 // pred_check_branch
      %227 = sbr.rel (%p225) target = $region40
    $region39: #{tpu_custom_call.1} parent=5 // pred_region
      // Predicated region
      $region41: #{tpu_custom_call.1} parent=39 // pred_check
        %p228 = pneg %p33
      $region42: #{tpu_custom_call.1} parent=39 // pred_check_branch
        %230 = sbr.rel (%p228) target = $region44
      $region43: #{tpu_custom_call.1} parent=39 // pred_region
        %s231 = smul.u32 32, %s13
        %p232 = scmp.lt.s32.totalorder %s231, 63
        %s233 = scalar_select %p232, %s231, 63
        %s234 = smul.addr %s233, 8
        %s235 = scalar_lea.vmem %s0, %s234
        %s236 = smul.u32 32, %s13
      $region44: #{tpu_custom_call.1} parent=39 // pred_fallthru
        _
    $region40: #{tpu_custom_call.1} parent=5 // pred_fallthru
      _
    %p237 = scmp.le.s32.totalorder 1, %s13
    %p238 = scmp.lt.s32.totalorder %s13, 3
    %p239 = pnand %p237, %p238
    %p240 = pneg %p239
    // Predicated region
    $region45: #{tpu_custom_call.1} parent=5 // pred_check
      _
    $region46: #{tpu_custom_call.1} parent=5 // pred_check_branch
      %242 = sbr.rel (%p239) target = $region48
    $region47: #{tpu_custom_call.1} parent=5 // pred_region
      %s243 = ssub.s32 %s13, 1
      %s244 = smul.u32 32, %s18
      %p245 = scmp.lt.s32.totalorder %s244, 63
      %s246 = scalar_select %p245, %s244, 63
      %s247 = smul.addr %s246, 8
      %s248 = scalar_lea.vmem %s0, %s247
      %p249 = pneg %p39
      %p250 = pneg %p36
      %p251 = pneg %p60
      %p252 = pneg %p57
      %p253 = pneg %p81
      %p254 = pneg %p78
      %p255 = pneg %p102
      %p256 = pneg %p99
      %p257 = pneg %p123
      %p258 = pneg %p120
      %p259 = pneg %p144
      %p260 = pneg %p141
      %p261 = pneg %p165
      %p262 = pneg %p162
      %p263 = pneg %p191
      %p264 = pneg %p188
      %s265 = smul.u32 32, %s18
      %p266 = scmp.lt.s32.totalorder %s265, 63
      %s267 = scalar_select %p266, %s265, 63
      %s268 = smul.addr %s267, 8
      %s269 = scalar_lea.vmem %s7, %s268
      %s270 = smul.u32 32, %s18
      %p271 = scmp.lt.s32.totalorder %s270, 63
      %s272 = scalar_select %p271, %s270, 63
      %s273 = smul.addr %s272, 8
      %s274 = scalar_lea.vmem %s0, %s273
      %s275 = smul.u32 32, %s18
      %s276 = smul.u32 32, %s18
      %p277 = scmp.lt.s32.totalorder %s276, 63
      %s278 = scalar_select %p277, %s276, 63
      %s279 = smul.addr %s278, 8
      %s280 = scalar_lea.vmem %s7, %s279
      %s281 = smul.u32 32, %s18
      %v283 = vld [vmem:[%s274] sm:$0xff]
      %v284 = vld [vmem:[%s274 + $0x8] sm:$0xff]
      %v285 = vld [vmem:[%s274 + $0x10] sm:$0xff]
      %v286 = vld [vmem:[%s274 + $0x18] sm:$0xff]
      %v287 = vld [vmem:[%s274 + $0x20] sm:$0xff]
      %v288 = vld [vmem:[%s274 + $0x28] sm:$0xff]
      %v289 = vld [vmem:[%s274 + $0x30] sm:$0xff]
      %v290 = vld [vmem:[%s274 + $0x38] sm:$0xff]
      %v291 = vld [vmem:[%s274 + $0x40] sm:$0xff]
      %v292 = vld [vmem:[%s274 + $0x48] sm:$0xff]
      %v293 = vld [vmem:[%s274 + $0x50] sm:$0xff]
      %v294 = vld [vmem:[%s274 + $0x58] sm:$0xff]
      %v295 = vld [vmem:[%s274 + $0x60] sm:$0xff]
      %v296 = vld [vmem:[%s274 + $0x68] sm:$0xff]
      %v297 = vld [vmem:[%s274 + $0x70] sm:$0xff]
      %v298 = vld [vmem:[%s274 + $0x78] sm:$0xff]
      %v299 = vld [vmem:[%s274 + $0x80] sm:$0xff]
      %v300 = vld [vmem:[%s274 + $0x88] sm:$0xff]
      %v301 = vld [vmem:[%s274 + $0x90] sm:$0xff]
      %v302 = vld [vmem:[%s274 + $0x98] sm:$0xff]
      %v303 = vld [vmem:[%s274 + $0xa0] sm:$0xff]
      %v304 = vld [vmem:[%s274 + $0xa8] sm:$0xff]
      %v305 = vld [vmem:[%s274 + $0xb0] sm:$0xff]
      %v306 = vld [vmem:[%s274 + $0xb8] sm:$0xff]
      %v307 = vld [vmem:[%s274 + $0xc0] sm:$0xff]
      %v308 = vld [vmem:[%s274 + $0xc8] sm:$0xff]
      %v309 = vld [vmem:[%s274 + $0xd0] sm:$0xff]
      %v310 = vld [vmem:[%s274 + $0xd8] sm:$0xff]
      %v311 = vld [vmem:[%s274 + $0xe0] sm:$0xff]
      %v312 = vld [vmem:[%s274 + $0xe8] sm:$0xff]
      %v313 = vld [vmem:[%s274 + $0xf0] sm:$0xff]
      %v314 = vld [vmem:[%s274 + $0xf8] sm:$0xff]
      %v315 = vpack.c.bf16 %v284, %v283
      %v316 = vpack.c.bf16 %v286, %v285
      %v317 = vpack.c.bf16 %v288, %v287
      %v318 = vpack.c.bf16 %v290, %v289
      %v319 = vpack.c.bf16 %v292, %v291
      %v320 = vpack.c.bf16 %v294, %v293
      %v321 = vpack.c.bf16 %v296, %v295
      %v322 = vpack.c.bf16 %v298, %v297
      %v323 = vpack.c.bf16 %v300, %v299
      %v324 = vpack.c.bf16 %v302, %v301
      %v325 = vpack.c.bf16 %v304, %v303
      %v326 = vpack.c.bf16 %v306, %v305
      %v327 = vpack.c.bf16 %v308, %v307
      %v328 = vpack.c.bf16 %v310, %v309
      %v329 = vpack.c.bf16 %v312, %v311
      %v330 = vpack.c.bf16 %v314, %v313
      %v331 = vld [vmem:[%s1] sm:$0xf]
      %v332 = vld [vmem:[%s2] sm:$0x3]
      %v334 = vlaneseq
      %v335 = vshrl.u32 %v334, 7
      %v336 = vsub.s32 0, %v335
      %v337 = vrot.slane %v332, %v336
      %v338 = vlaneseq
      %v339 = vshrl.u32 %v338, 7
      %v340 = vsub.s32 1, %v339
      %v341 = vrot.slane %v332, %v340
      %v346 = vunpack.c.l.s4 1983009808
      %v347 = vunpack.c.0.s8 %v346
      %v348 = vlaneseq
      %v349 = vshrl.u32 %v348, 7
      %v350 = vsub.s32 %v347, %v349
      %v351 = vrot.slane %v331, %v350
      %v352 = vcombine.high %v351, %v351
      %vm353 = vcmask 23552
      %v355 = vsel %vm353, %v315, 0
      %v358 = vsel %vm353, %v316, 0
      %v361 = vsel %vm353, %v317, 0
      %v364 = vsel %vm353, %v318, 0
      %v367 = vsel %vm353, %v319, 0
      %v370 = vsel %vm353, %v320, 0
      %v373 = vsel %vm353, %v321, 0
      %v376 = vsel %vm353, %v322, 0
      %v379 = vsel %vm353, %v323, 0
      %v382 = vsel %vm353, %v324, 0
      %v385 = vsel %vm353, %v325, 0
      %v388 = vsel %vm353, %v326, 0
      %v391 = vsel %vm353, %v327, 0
      %v394 = vsel %vm353, %v328, 0
      %v397 = vsel %vm353, %v329, 0
      %v400 = vsel %vm353, %v330, 0
      %vm402 = vcmask 1040384
      %vm403 = vcmask 1041408
      %v404 = vsel %vm402, 4294967295, 65535
      %v405 = vsel %vm403, %v404, 0
      %v407 = vand.u32 %v351, %v405
      %v410 = vand.u32 %v352, %v405
      %412 = vmatprep.subr.bf16.mxu0 %v410
      %413 = vmatpush1.bf16.msra.mxu0 %v407
      %414 = vmatprep.subr.bf16.mxu0 0
      %415 = vmatpush1.bf16.msra.mxu0 0
      %416 = vmatprep.subr.bf16.mxu0 0
      %417 = vmatpush1.bf16.msra.mxu0 0
      %418 = vmatprep.subr.bf16.mxu0 0
      %419 = vmatpush1.bf16.msra.mxu0 0
      %420 = vmatprep.subr.bf16.mxu0 0
      %421 = vmatpush1.bf16.msra.mxu0 0
      %422 = vmatprep.subr.bf16.mxu0 0
      %423 = vmatpush1.bf16.msra.mxu0 0
      %424 = vmatprep.subr.bf16.mxu0 0
      %425 = vmatpush1.bf16.msra.mxu0 0
      %426 = vmatprep.subr.bf16.mxu0 0
      %427 = vmatpush1.bf16.msra.mxu0 0
      %428 = vmatprep.subr.bf16.mxu0 0
      %429 = vmatpush1.bf16.msra.mxu0 0
      %430 = vmatprep.subr.bf16.mxu0 0
      %431 = vmatpush1.bf16.msra.mxu0 0
      %432 = vmatprep.subr.bf16.mxu0 0
      %433 = vmatpush1.bf16.msra.mxu0 0
      %434 = vmatprep.subr.bf16.mxu0 0
      %435 = vmatpush1.bf16.msra.mxu0 0
      %436 = vmatprep.subr.bf16.mxu0 0
      %437 = vmatpush1.bf16.msra.mxu0 0
      %438 = vmatprep.subr.bf16.mxu0 0
      %439 = vmatpush1.bf16.msra.mxu0 0
      %440 = vmatprep.subr.bf16.mxu0 0
      %441 = vmatpush1.bf16.msra.mxu0 0
      %442 = vmatprep.subr.bf16.mxu0 0
      %443 = vmatpush1.bf16.msra.mxu0 0
      %444 = vmatprep.mubr.bf16.mxu0 0
      %445 = vmatmul.mubr.bf16.gmra.mrb[0].mxu0 %v355
      %v446 = vpop.f32.mrb[0].mxu0
      %v447 = vadd.f32 %v337, %v446
      %v448 = vpop.f32.mrb[0].mxu0
      %v449 = vadd.f32 %v341, %v448
      %v450 = vpop.f32.mrb[0].mxu0
      %v451 = vadd.f32 %v337, %v450
      %v452 = vpop.f32.mrb[0].mxu0
      %v453 = vadd.f32 %v341, %v452
      %454 = vmatprep.mubr.bf16.mxu0 0
      %455 = vmatmul.mubr.bf16.gmra.mrb[0].mxu0 %v358
      %v456 = vpop.f32.mrb[0].mxu0
      %v457 = vadd.f32 %v337, %v456
      %v458 = vpop.f32.mrb[0].mxu0
      %v459 = vadd.f32 %v341, %v458
      %v460 = vpop.f32.mrb[0].mxu0
      %v461 = vadd.f32 %v337, %v460
      %v462 = vpop.f32.mrb[0].mxu0
      %v463 = vadd.f32 %v341, %v462
      %464 = vmatprep.mubr.bf16.mxu0 0
      %465 = vmatmul.mubr.bf16.gmra.mrb[0].mxu0 %v361
      %v466 = vpop.f32.mrb[0].mxu0
      %v467 = vadd.f32 %v337, %v466
      %v468 = vpop.f32.mrb[0].mxu0
      %v469 = vadd.f32 %v341, %v468
      %v470 = vpop.f32.mrb[0].mxu0
      %v471 = vadd.f32 %v337, %v470
      %v472 = vpop.f32.mrb[0].mxu0
      %v473 = vadd.f32 %v341, %v472
      %474 = vmatprep.mubr.bf16.mxu0 0
      %475 = vmatmul.mubr.bf16.gmra.mrb[0].mxu0 %v364
      %v476 = vpop.f32.mrb[0].mxu0
      %v477 = vadd.f32 %v337, %v476
      %v478 = vpop.f32.mrb[0].mxu0
      %v479 = vadd.f32 %v341, %v478
      %v480 = vpop.f32.mrb[0].mxu0
      %v481 = vadd.f32 %v337, %v480
      %v482 = vpop.f32.mrb[0].mxu0
      %v483 = vadd.f32 %v341, %v482
      %484 = vmatprep.mubr.bf16.mxu0 0
      %485 = vmatmul.mubr.bf16.gmra.mrb[0].mxu0 %v367
      %v486 = vpop.f32.mrb[0].mxu0
      %v487 = vadd.f32 %v337, %v486
      %v488 = vpop.f32.mrb[0].mxu0
      %v489 = vadd.f32 %v341, %v488
      %v490 = vpop.f32.mrb[0].mxu0
      %v491 = vadd.f32 %v337, %v490
      %v492 = vpop.f32.mrb[0].mxu0
      %v493 = vadd.f32 %v341, %v492
      %494 = vmatprep.mubr.bf16.mxu0 0
      %495 = vmatmul.mubr.bf16.gmra.mrb[0].mxu0 %v370
      %v496 = vpop.f32.mrb[0].mxu0
      %v497 = vadd.f32 %v337, %v496
      %v498 = vpop.f32.mrb[0].mxu0
      %v499 = vadd.f32 %v341, %v498
      %v500 = vpop.f32.mrb[0].mxu0
      %v501 = vadd.f32 %v337, %v500
      %v502 = vpop.f32.mrb[0].mxu0
      %v503 = vadd.f32 %v341, %v502
      %504 = vmatprep.mubr.bf16.mxu0 0
      %505 = vmatmul.mubr.bf16.gmra.mrb[0].mxu0 %v373
      %v506 = vpop.f32.mrb[0].mxu0
      %v507 = vadd.f32 %v337, %v506
      %v508 = vpop.f32.mrb[0].mxu0
      %v509 = vadd.f32 %v341, %v508
      %v510 = vpop.f32.mrb[0].mxu0
      %v511 = vadd.f32 %v337, %v510
      %v512 = vpop.f32.mrb[0].mxu0
      %v513 = vadd.f32 %v341, %v512
      %514 = vmatprep.mubr.bf16.mxu0 0
      %515 = vmatmul.mubr.bf16.gmra.mrb[0].mxu0 %v376
      %v516 = vpop.f32.mrb[0].mxu0
      %v517 = vadd.f32 %v337, %v516
      %v518 = vpop.f32.mrb[0].mxu0
      %v519 = vadd.f32 %v341, %v518
      %v520 = vpop.f32.mrb[0].mxu0
      %v521 = vadd.f32 %v337, %v520
      %v522 = vpop.f32.mrb[0].mxu0
      %v523 = vadd.f32 %v341, %v522
      %524 = vmatprep.mubr.bf16.mxu0 0
      %525 = vmatmul.mubr.bf16.gmra.mrb[0].mxu0 %v379
      %v526 = vpop.f32.mrb[0].mxu0
      %v527 = vadd.f32 %v337, %v526
      %v528 = vpop.f32.mrb[0].mxu0
      %v529 = vadd.f32 %v341, %v528
      %v530 = vpop.f32.mrb[0].mxu0
      %v531 = vadd.f32 %v337, %v530
      %v532 = vpop.f32.mrb[0].mxu0
      %v533 = vadd.f32 %v341, %v532
      %534 = vmatprep.mubr.bf16.mxu0 0
      %535 = vmatmul.mubr.bf16.gmra.mrb[0].mxu0 %v382
      %v536 = vpop.f32.mrb[0].mxu0
      %v537 = vadd.f32 %v337, %v536
      %v538 = vpop.f32.mrb[0].mxu0
      %v539 = vadd.f32 %v341, %v538
      %v540 = vpop.f32.mrb[0].mxu0
      %v541 = vadd.f32 %v337, %v540
      %v542 = vpop.f32.mrb[0].mxu0
      %v543 = vadd.f32 %v341, %v542
      %544 = vmatprep.mubr.bf16.mxu0 0
      %545 = vmatmul.mubr.bf16.gmra.mrb[0].mxu0 %v385
      %v546 = vpop.f32.mrb[0].mxu0
      %v547 = vadd.f32 %v337, %v546
      %v548 = vpop.f32.mrb[0].mxu0
      %v549 = vadd.f32 %v341, %v548
      %v550 = vpop.f32.mrb[0].mxu0
      %v551 = vadd.f32 %v337, %v550
      %v552 = vpop.f32.mrb[0].mxu0
      %v553 = vadd.f32 %v341, %v552
      %554 = vmatprep.mubr.bf16.mxu0 0
      %555 = vmatmul.mubr.bf16.gmra.mrb[0].mxu0 %v388
      %v556 = vpop.f32.mrb[0].mxu0
      %v557 = vadd.f32 %v337, %v556
      %v558 = vpop.f32.mrb[0].mxu0
      %v559 = vadd.f32 %v341, %v558
      %v560 = vpop.f32.mrb[0].mxu0
      %v561 = vadd.f32 %v337, %v560
      %v562 = vpop.f32.mrb[0].mxu0
      %v563 = vadd.f32 %v341, %v562
      %564 = vmatprep.mubr.bf16.mxu0 0
      %565 = vmatmul.mubr.bf16.gmra.mrb[0].mxu0 %v391
      %v566 = vpop.f32.mrb[0].mxu0
      %v567 = vadd.f32 %v337, %v566
      %v568 = vpop.f32.mrb[0].mxu0
      %v569 = vadd.f32 %v341, %v568
      %v570 = vpop.f32.mrb[0].mxu0
      %v571 = vadd.f32 %v337, %v570
      %v572 = vpop.f32.mrb[0].mxu0
      %v573 = vadd.f32 %v341, %v572
      %574 = vmatprep.mubr.bf16.mxu0 0
      %575 = vmatmul.mubr.bf16.gmra.mrb[0].mxu0 %v394
      %v576 = vpop.f32.mrb[0].mxu0
      %v577 = vadd.f32 %v337, %v576
      %v578 = vpop.f32.mrb[0].mxu0
      %v579 = vadd.f32 %v341, %v578
      %v580 = vpop.f32.mrb[0].mxu0
      %v581 = vadd.f32 %v337, %v580
      %v582 = vpop.f32.mrb[0].mxu0
      %v583 = vadd.f32 %v341, %v582
      %584 = vmatprep.mubr.bf16.mxu0 0
      %585 = vmatmul.mubr.bf16.gmra.mrb[0].mxu0 %v397
      %v586 = vpop.f32.mrb[0].mxu0
      %v587 = vadd.f32 %v337, %v586
      %v588 = vpop.f32.mrb[0].mxu0
      %v589 = vadd.f32 %v341, %v588
      %v590 = vpop.f32.mrb[0].mxu0
      %v591 = vadd.f32 %v337, %v590
      %v592 = vpop.f32.mrb[0].mxu0
      %v593 = vadd.f32 %v341, %v592
      %594 = vmatprep.mubr.bf16.mxu0 0
      %595 = vmatmul.mubr.bf16.gmra.mrb[0].mxu0 %v400
      %v596 = vpop.f32.mrb[0].mxu0
      %v597 = vadd.f32 %v337, %v596
      %v598 = vpop.f32.mrb[0].mxu0
      %v599 = vadd.f32 %v341, %v598
      %v600 = vpop.f32.mrb[0].mxu0
      %v601 = vadd.f32 %v337, %v600
      %v602 = vpop.f32.mrb[0].mxu0
      %v603 = vadd.f32 %v341, %v602
      %604 = vdwg.mxu0
      %v605 = vmul.f32 %v447, 0.2
      %v606 = vmul.f32 %v449, 0.2
      %v607 = vmul.f32 %v451, 0.2
      %v608 = vmul.f32 %v453, 0.2
      %v609 = vmul.f32 %v457, 0.2
      %v610 = vmul.f32 %v459, 0.2
      %v611 = vmul.f32 %v461, 0.2
      %v612 = vmul.f32 %v463, 0.2
      %v613 = vmul.f32 %v467, 0.2
      %v614 = vmul.f32 %v469, 0.2
      %v615 = vmul.f32 %v471, 0.2
      %v616 = vmul.f32 %v473, 0.2
      %v617 = vmul.f32 %v477, 0.2
      %v618 = vmul.f32 %v479, 0.2
      %v619 = vmul.f32 %v481, 0.2
      %v620 = vmul.f32 %v483, 0.2
      %v621 = vmul.f32 %v487, 0.2
      %v622 = vmul.f32 %v489, 0.2
      %v623 = vmul.f32 %v491, 0.2
      %v624 = vmul.f32 %v493, 0.2
      %v625 = vmul.f32 %v497, 0.2
      %v626 = vmul.f32 %v499, 0.2
      %v627 = vmul.f32 %v501, 0.2
      %v628 = vmul.f32 %v503, 0.2
      %v629 = vmul.f32 %v507, 0.2
      %v630 = vmul.f32 %v509, 0.2
      %v631 = vmul.f32 %v511, 0.2
      %v632 = vmul.f32 %v513, 0.2
      %v633 = vmul.f32 %v517, 0.2
      %v634 = vmul.f32 %v519, 0.2
      %v635 = vmul.f32 %v521, 0.2
      %v636 = vmul.f32 %v523, 0.2
      %v637 = vmul.f32 %v527, 0.2
      %v638 = vmul.f32 %v529, 0.2
      %v639 = vmul.f32 %v531, 0.2
      %v640 = vmul.f32 %v533, 0.2
      %v641 = vmul.f32 %v537, 0.2
      %v642 = vmul.f32 %v539, 0.2
      %v643 = vmul.f32 %v541, 0.2
      %v644 = vmul.f32 %v543, 0.2
      %v645 = vmul.f32 %v547, 0.2
      %v646 = vmul.f32 %v549, 0.2
      %v647 = vmul.f32 %v551, 0.2
      %v648 = vmul.f32 %v553, 0.2
      %v649 = vmul.f32 %v557, 0.2
      %v650 = vmul.f32 %v559, 0.2
      %v651 = vmul.f32 %v561, 0.2
      %v652 = vmul.f32 %v563, 0.2
      %v653 = vmul.f32 %v567, 0.2
      %v654 = vmul.f32 %v569, 0.2
      %v655 = vmul.f32 %v571, 0.2
      %v656 = vmul.f32 %v573, 0.2
      %v657 = vmul.f32 %v577, 0.2
      %v658 = vmul.f32 %v579, 0.2
      %v659 = vmul.f32 %v581, 0.2
      %v660 = vmul.f32 %v583, 0.2
      %v661 = vmul.f32 %v587, 0.2
      %v662 = vmul.f32 %v589, 0.2
      %v663 = vmul.f32 %v591, 0.2
      %v664 = vmul.f32 %v593, 0.2
      %v665 = vmul.f32 %v597, 0.2
      %v666 = vmul.f32 %v599, 0.2
      %v667 = vmul.f32 %v601, 0.2
      %v668 = vmul.f32 %v603, 0.2
      %v669 = vmax.f32 %v447, %v605
      %v670 = vmax.f32 %v449, %v606
      %v671 = vmax.f32 %v451, %v607
      %v672 = vmax.f32 %v453, %v608
      %v673 = vmax.f32 %v457, %v609
      %v674 = vmax.f32 %v459, %v610
      %v675 = vmax.f32 %v461, %v611
      %v676 = vmax.f32 %v463, %v612
      %v677 = vmax.f32 %v467, %v613
      %v678 = vmax.f32 %v469, %v614
      %v679 = vmax.f32 %v471, %v615
      %v680 = vmax.f32 %v473, %v616
      %v681 = vmax.f32 %v477, %v617
      %v682 = vmax.f32 %v479, %v618
      %v683 = vmax.f32 %v481, %v619
      %v684 = vmax.f32 %v483, %v620
      %v685 = vmax.f32 %v487, %v621
      %v686 = vmax.f32 %v489, %v622
      %v687 = vmax.f32 %v491, %v623
      %v688 = vmax.f32 %v493, %v624
      %v689 = vmax.f32 %v497, %v625
      %v690 = vmax.f32 %v499, %v626
      %v691 = vmax.f32 %v501, %v627
      %v692 = vmax.f32 %v503, %v628
      %v693 = vmax.f32 %v507, %v629
      %v694 = vmax.f32 %v509, %v630
      %v695 = vmax.f32 %v511, %v631
      %v696 = vmax.f32 %v513, %v632
      %v697 = vmax.f32 %v517, %v633
      %v698 = vmax.f32 %v519, %v634
      %v699 = vmax.f32 %v521, %v635
      %v700 = vmax.f32 %v523, %v636
      %v701 = vmax.f32 %v527, %v637
      %v702 = vmax.f32 %v529, %v638
      %v703 = vmax.f32 %v531, %v639
      %v704 = vmax.f32 %v533, %v640
      %v705 = vmax.f32 %v537, %v641
      %v706 = vmax.f32 %v539, %v642
      %v707 = vmax.f32 %v541, %v643
      %v708 = vmax.f32 %v543, %v644
      %v709 = vmax.f32 %v547, %v645
      %v710 = vmax.f32 %v549, %v646
      %v711 = vmax.f32 %v551, %v647
      %v712 = vmax.f32 %v553, %v648
      %v713 = vmax.f32 %v557, %v649
      %v714 = vmax.f32 %v559, %v650
      %v715 = vmax.f32 %v561, %v651
      %v716 = vmax.f32 %v563, %v652
      %v717 = vmax.f32 %v567, %v653
      %v718 = vmax.f32 %v569, %v654
      %v719 = vmax.f32 %v571, %v655
      %v720 = vmax.f32 %v573, %v656
      %v721 = vmax.f32 %v577, %v657
      %v722 = vmax.f32 %v579, %v658
      %v723 = vmax.f32 %v581, %v659
      %v724 = vmax.f32 %v583, %v660
      %v725 = vmax.f32 %v587, %v661
      %v726 = vmax.f32 %v589, %v662
      %v727 = vmax.f32 %v591, %v663
      %v728 = vmax.f32 %v593, %v664
      %v729 = vmax.f32 %v597, %v665
      %v730 = vmax.f32 %v599, %v666
      %v731 = vmax.f32 %v601, %v667
      %v732 = vmax.f32 %v603, %v668
      %v733 = vpack.c.bf16 %v671, %v669
      %v734 = vpack.c.bf16 %v675, %v673
      %v735 = vpack.c.bf16 %v679, %v677
      %v736 = vpack.c.bf16 %v683, %v681
      %v737 = vpack.c.bf16 %v687, %v685
      %v738 = vpack.c.bf16 %v691, %v689
      %v739 = vpack.c.bf16 %v695, %v693
      %v740 = vpack.c.bf16 %v699, %v697
      %v741 = vpack.c.bf16 %v703, %v701
      %v742 = vpack.c.bf16 %v707, %v705
      %v743 = vpack.c.bf16 %v711, %v709
      %v744 = vpack.c.bf16 %v715, %v713
      %v745 = vpack.c.bf16 %v719, %v717
      %v746 = vpack.c.bf16 %v723, %v721
      %v747 = vpack.c.bf16 %v727, %v725
      %v748 = vpack.c.bf16 %v731, %v729
      %v749 = vld [vmem:[%s3] sm:$0xf]
      %v750 = vld [vmem:[%s3 + $0x4] sm:$0xf]
      %v751 = vld [vmem:[%s3 + $0x8] sm:$0xf]
      %v752 = vld [vmem:[%s3 + $0xc] sm:$0xf]
      %v753 = vld [vmem:[%s3 + $0x10] sm:$0xf]
      %v754 = vld [vmem:[%s3 + $0x14] sm:$0xf]
      %v755 = vld [vmem:[%s3 + $0x18] sm:$0xf]
      %v756 = vld [vmem:[%s3 + $0x1c] sm:$0xf]
      %v757 = vld [vmem:[%s3 + $0x20] sm:$0xf]
      %v758 = vld [vmem:[%s3 + $0x24] sm:$0xf]
      %v759 = vld [vmem:[%s3 + $0x28] sm:$0xf]
      %v760 = vld [vmem:[%s3 + $0x2c] sm:$0xf]
      %v761 = vld [vmem:[%s3 + $0x30] sm:$0xf]
      %v762 = vld [vmem:[%s3 + $0x34] sm:$0xf]
      %v763 = vld [vmem:[%s3 + $0x38] sm:$0xf]
      %v764 = vld [vmem:[%s3 + $0x3c] sm:$0xf]
      %v765 = vld [vmem:[%s4] sm:$0x1]
      %v766 = vlaneseq
      %v767 = vshrl.u32 %v766, 7
      %v768 = vsub.s32 0, %v767
      %v769 = vrot.slane %v765, %v768
      %v786 = vunpack.c.l.b16 %v749
      %v787 = vunpack.c.l.b16 %v750
      %v788 = vunpack.c.l.b16 %v751
      %v789 = vunpack.c.l.b16 %v752
      %v790 = vunpack.c.l.b16 %v753
      %v791 = vunpack.c.l.b16 %v754
      %v792 = vunpack.c.l.b16 %v755
      %v793 = vunpack.c.l.b16 %v756
      %v794 = vunpack.c.l.b16 %v757
      %v795 = vunpack.c.l.b16 %v758
      %v796 = vunpack.c.l.b16 %v759
      %v797 = vunpack.c.l.b16 %v760
      %v798 = vunpack.c.l.b16 %v761
      %v799 = vunpack.c.l.b16 %v762
      %v800 = vunpack.c.l.b16 %v763
      %v801 = vunpack.c.l.b16 %v764
      %v802 = vpack.c.b16 %v787, %v786
      %v803 = vpack.c.b16 %v789, %v788
      %v804 = vpack.c.b16 %v791, %v790
      %v805 = vpack.c.b16 %v793, %v792
      %v806 = vpack.c.b16 %v795, %v794
      %v807 = vpack.c.b16 %v797, %v796
      %v808 = vpack.c.b16 %v799, %v798
      %v809 = vpack.c.b16 %v801, %v800
      %818 = vmatprep.subr.bf16.mxu0 0
      %819 = vmatpush1.bf16.msra.mxu0 %v802
      %820 = vmatprep.subr.bf16.mxu0 0
      %821 = vmatpush1.bf16.msra.mxu0 %v803
      %822 = vmatprep.subr.bf16.mxu0 0
      %823 = vmatpush1.bf16.msra.mxu0 %v804
      %824 = vmatprep.subr.bf16.mxu0 0
      %825 = vmatpush1.bf16.msra.mxu0 %v805
      %826 = vmatprep.subr.bf16.mxu0 0
      %827 = vmatpush1.bf16.msra.mxu0 %v806
      %828 = vmatprep.subr.bf16.mxu0 0
      %829 = vmatpush1.bf16.msra.mxu0 %v807
      %830 = vmatprep.subr.bf16.mxu0 0
      %831 = vmatpush1.bf16.msra.mxu0 %v808
      %832 = vmatprep.subr.bf16.mxu0 0
      %833 = vmatpush1.bf16.msra.mxu0 %v809
      %834 = vmatprep.subr.bf16.mxu0 0
      %835 = vmatpush1.bf16.msra.mxu0 0
      %836 = vmatprep.subr.bf16.mxu0 0
      %837 = vmatpush1.bf16.msra.mxu0 0
      %838 = vmatprep.subr.bf16.mxu0 0
      %839 = vmatpush1.bf16.msra.mxu0 0
      %840 = vmatprep.subr.bf16.mxu0 0
      %841 = vmatpush1.bf16.msra.mxu0 0
      %842 = vmatprep.subr.bf16.mxu0 0
      %843 = vmatpush1.bf16.msra.mxu0 0
      %844 = vmatprep.subr.bf16.mxu0 0
      %845 = vmatpush1.bf16.msra.mxu0 0
      %846 = vmatprep.subr.bf16.mxu0 0
      %847 = vmatpush1.bf16.msra.mxu0 0
      %848 = vmatprep.subr.bf16.mxu0 0
      %849 = vmatpush1.bf16.msra.mxu0 0
      %850 = vmatprep.mubr.bf16.mxu0 0
      %851 = vmatmul.mubr.bf16.gmra.mrb[0].mxu0 %v733
      %v852 = vpop.f32.mrb[0].mxu0
      %v853 = vadd.f32 %v769, %v852
      %v854 = vpop.f32.mrb[0].mxu0
      %v855 = vpop.f32.mrb[0].mxu0
      %v856 = vadd.f32 %v769, %v855
      %v857 = vpop.f32.mrb[0].mxu0
      %858 = vmatprep.mubr.bf16.mxu0 0
      %859 = vmatmul.mubr.bf16.gmra.mrb[0].mxu0 %v734
      %v860 = vpop.f32.mrb[0].mxu0
      %v861 = vadd.f32 %v769, %v860
      %v862 = vpop.f32.mrb[0].mxu0
      %v863 = vpop.f32.mrb[0].mxu0
      %v864 = vadd.f32 %v769, %v863
      %v865 = vpop.f32.mrb[0].mxu0
      %866 = vmatprep.mubr.bf16.mxu0 0
      %867 = vmatmul.mubr.bf16.gmra.mrb[0].mxu0 %v735
      %v868 = vpop.f32.mrb[0].mxu0
      %v869 = vadd.f32 %v769, %v868
      %v870 = vpop.f32.mrb[0].mxu0
      %v871 = vpop.f32.mrb[0].mxu0
      %v872 = vadd.f32 %v769, %v871
      %v873 = vpop.f32.mrb[0].mxu0
      %874 = vmatprep.mubr.bf16.mxu0 0
      %875 = vmatmul.mubr.bf16.gmra.mrb[0].mxu0 %v736
      %v876 = vpop.f32.mrb[0].mxu0
      %v877 = vadd.f32 %v769, %v876
      %v878 = vpop.f32.mrb[0].mxu0
      %v879 = vpop.f32.mrb[0].mxu0
      %v880 = vadd.f32 %v769, %v879
      %v881 = vpop.f32.mrb[0].mxu0
      %882 = vmatprep.mubr.bf16.mxu0 0
      %883 = vmatmul.mubr.bf16.gmra.mrb[0].mxu0 %v737
      %v884 = vpop.f32.mrb[0].mxu0
      %v885 = vadd.f32 %v769, %v884
      %v886 = vpop.f32.mrb[0].mxu0
      %v887 = vpop.f32.mrb[0].mxu0
      %v888 = vadd.f32 %v769, %v887
      %v889 = vpop.f32.mrb[0].mxu0
      %890 = vmatprep.mubr.bf16.mxu0 0
      %891 = vmatmul.mubr.bf16.gmra.mrb[0].mxu0 %v738
      %v892 = vpop.f32.mrb[0].mxu0
      %v893 = vadd.f32 %v769, %v892
      %v894 = vpop.f32.mrb[0].mxu0
      %v895 = vpop.f32.mrb[0].mxu0
      %v896 = vadd.f32 %v769, %v895
      %v897 = vpop.f32.mrb[0].mxu0
      %898 = vmatprep.mubr.bf16.mxu0 0
      %899 = vmatmul.mubr.bf16.gmra.mrb[0].mxu0 %v739
      %v900 = vpop.f32.mrb[0].mxu0
      %v901 = vadd.f32 %v769, %v900
      %v902 = vpop.f32.mrb[0].mxu0
      %v903 = vpop.f32.mrb[0].mxu0
      %v904 = vadd.f32 %v769, %v903
      %v905 = vpop.f32.mrb[0].mxu0
      %906 = vmatprep.mubr.bf16.mxu0 0
      %907 = vmatmul.mubr.bf16.gmra.mrb[0].mxu0 %v740
      %v908 = vpop.f32.mrb[0].mxu0
      %v909 = vadd.f32 %v769, %v908
      %v910 = vpop.f32.mrb[0].mxu0
      %v911 = vpop.f32.mrb[0].mxu0
      %v912 = vadd.f32 %v769, %v911
      %v913 = vpop.f32.mrb[0].mxu0
      %914 = vmatprep.mubr.bf16.mxu0 0
      %915 = vmatmul.mubr.bf16.gmra.mrb[0].mxu0 %v741
      %v916 = vpop.f32.mrb[0].mxu0
      %v917 = vadd.f32 %v769, %v916
      %v918 = vpop.f32.mrb[0].mxu0
      %v919 = vpop.f32.mrb[0].mxu0
      %v920 = vadd.f32 %v769, %v919
      %v921 = vpop.f32.mrb[0].mxu0
      %922 = vmatprep.mubr.bf16.mxu0 0
      %923 = vmatmul.mubr.bf16.gmra.mrb[0].mxu0 %v742
      %v924 = vpop.f32.mrb[0].mxu0
      %v925 = vadd.f32 %v769, %v924
      %v926 = vpop.f32.mrb[0].mxu0
      %v927 = vpop.f32.mrb[0].mxu0
      %v928 = vadd.f32 %v769, %v927
      %v929 = vpop.f32.mrb[0].mxu0
      %930 = vmatprep.mubr.bf16.mxu0 0
      %931 = vmatmul.mubr.bf16.gmra.mrb[0].mxu0 %v743
      %v932 = vpop.f32.mrb[0].mxu0
      %v933 = vadd.f32 %v769, %v932
      %v934 = vpop.f32.mrb[0].mxu0
      %v935 = vpop.f32.mrb[0].mxu0
      %v936 = vadd.f32 %v769, %v935
      %v937 = vpop.f32.mrb[0].mxu0
      %938 = vmatprep.mubr.bf16.mxu0 0
      %939 = vmatmul.mubr.bf16.gmra.mrb[0].mxu0 %v744
      %v940 = vpop.f32.mrb[0].mxu0
      %v941 = vadd.f32 %v769, %v940
      %v942 = vpop.f32.mrb[0].mxu0
      %v943 = vpop.f32.mrb[0].mxu0
      %v944 = vadd.f32 %v769, %v943
      %v945 = vpop.f32.mrb[0].mxu0
      %946 = vmatprep.mubr.bf16.mxu0 0
      %947 = vmatmul.mubr.bf16.gmra.mrb[0].mxu0 %v745
      %v948 = vpop.f32.mrb[0].mxu0
      %v949 = vadd.f32 %v769, %v948
      %v950 = vpop.f32.mrb[0].mxu0
      %v951 = vpop.f32.mrb[0].mxu0
      %v952 = vadd.f32 %v769, %v951
      %v953 = vpop.f32.mrb[0].mxu0
      %954 = vmatprep.mubr.bf16.mxu0 0
      %955 = vmatmul.mubr.bf16.gmra.mrb[0].mxu0 %v746
      %v956 = vpop.f32.mrb[0].mxu0
      %v957 = vadd.f32 %v769, %v956
      %v958 = vpop.f32.mrb[0].mxu0
      %v959 = vpop.f32.mrb[0].mxu0
      %v960 = vadd.f32 %v769, %v959
      %v961 = vpop.f32.mrb[0].mxu0
      %962 = vmatprep.mubr.bf16.mxu0 0
      %963 = vmatmul.mubr.bf16.gmra.mrb[0].mxu0 %v747
      %v964 = vpop.f32.mrb[0].mxu0
      %v965 = vadd.f32 %v769, %v964
      %v966 = vpop.f32.mrb[0].mxu0
      %v967 = vpop.f32.mrb[0].mxu0
      %v968 = vadd.f32 %v769, %v967
      %v969 = vpop.f32.mrb[0].mxu0
      %970 = vmatprep.mubr.bf16.mxu0 0
      %971 = vmatmul.mubr.bf16.gmra.mrb[0].mxu0 %v748
      %v972 = vpop.f32.mrb[0].mxu0
      %v973 = vadd.f32 %v769, %v972
      %v974 = vpop.f32.mrb[0].mxu0
      %v975 = vpop.f32.mrb[0].mxu0
      %v976 = vadd.f32 %v769, %v975
      %v977 = vpop.f32.mrb[0].mxu0
      %978 = vdwg.mxu0
      %v979 = vmul.f32 %v853, 0.2
      %v980 = vmul.f32 %v856, 0.2
      %v981 = vmul.f32 %v861, 0.2
      %v982 = vmul.f32 %v864, 0.2
      %v983 = vmul.f32 %v869, 0.2
      %v984 = vmul.f32 %v872, 0.2
      %v985 = vmul.f32 %v877, 0.2
      %v986 = vmul.f32 %v880, 0.2
      %v987 = vmul.f32 %v885, 0.2
      %v988 = vmul.f32 %v888, 0.2
      %v989 = vmul.f32 %v893, 0.2
      %v990 = vmul.f32 %v896, 0.2
      %v991 = vmul.f32 %v901, 0.2
      %v992 = vmul.f32 %v904, 0.2
      %v993 = vmul.f32 %v909, 0.2
      %v994 = vmul.f32 %v912, 0.2
      %v995 = vmul.f32 %v917, 0.2
      %v996 = vmul.f32 %v920, 0.2
      %v997 = vmul.f32 %v925, 0.2
      %v998 = vmul.f32 %v928, 0.2
      %v999 = vmul.f32 %v933, 0.2
      %v1000 = vmul.f32 %v936, 0.2
      %v1001 = vmul.f32 %v941, 0.2
      %v1002 = vmul.f32 %v944, 0.2
      %v1003 = vmul.f32 %v949, 0.2
      %v1004 = vmul.f32 %v952, 0.2
      %v1005 = vmul.f32 %v957, 0.2
      %v1006 = vmul.f32 %v960, 0.2
      %v1007 = vmul.f32 %v965, 0.2
      %v1008 = vmul.f32 %v968, 0.2
      %v1009 = vmul.f32 %v973, 0.2
      %v1010 = vmul.f32 %v976, 0.2
      %v1011 = vmax.f32 %v853, %v979
      %v1012 = vmax.f32 %v856, %v980
      %v1013 = vmax.f32 %v861, %v981
      %v1014 = vmax.f32 %v864, %v982
      %v1015 = vmax.f32 %v869, %v983
      %v1016 = vmax.f32 %v872, %v984
      %v1017 = vmax.f32 %v877, %v985
      %v1018 = vmax.f32 %v880, %v986
      %v1019 = vmax.f32 %v885, %v987
      %v1020 = vmax.f32 %v888, %v988
      %v1021 = vmax.f32 %v893, %v989
      %v1022 = vmax.f32 %v896, %v990
      %v1023 = vmax.f32 %v901, %v991
      %v1024 = vmax.f32 %v904, %v992
      %v1025 = vmax.f32 %v909, %v993
      %v1026 = vmax.f32 %v912, %v994
      %v1027 = vmax.f32 %v917, %v995
      %v1028 = vmax.f32 %v920, %v996
      %v1029 = vmax.f32 %v925, %v997
      %v1030 = vmax.f32 %v928, %v998
      %v1031 = vmax.f32 %v933, %v999
      %v1032 = vmax.f32 %v936, %v1000
      %v1033 = vmax.f32 %v941, %v1001
      %v1034 = vmax.f32 %v944, %v1002
      %v1035 = vmax.f32 %v949, %v1003
      %v1036 = vmax.f32 %v952, %v1004
      %v1037 = vmax.f32 %v957, %v1005
      %v1038 = vmax.f32 %v960, %v1006
      %v1039 = vmax.f32 %v965, %v1007
      %v1040 = vmax.f32 %v968, %v1008
      %v1041 = vmax.f32 %v973, %v1009
      %v1042 = vmax.f32 %v976, %v1010
      %v1043 = vpack.c.bf16 %v1012, %v1011
      %v1044 = vpack.c.bf16 %v1014, %v1013
      %v1045 = vpack.c.bf16 %v1016, %v1015
      %v1046 = vpack.c.bf16 %v1018, %v1017
      %v1047 = vpack.c.bf16 %v1020, %v1019
      %v1048 = vpack.c.bf16 %v1022, %v1021
      %v1049 = vpack.c.bf16 %v1024, %v1023
      %v1050 = vpack.c.bf16 %v1026, %v1025
      %v1051 = vpack.c.bf16 %v1028, %v1027
      %v1052 = vpack.c.bf16 %v1030, %v1029
      %v1053 = vpack.c.bf16 %v1032, %v1031
      %v1054 = vpack.c.bf16 %v1034, %v1033
      %v1055 = vpack.c.bf16 %v1036, %v1035
      %v1056 = vpack.c.bf16 %v1038, %v1037
      %v1057 = vpack.c.bf16 %v1040, %v1039
      %v1058 = vpack.c.bf16 %v1042, %v1041
      %s1059 = scalar_lea.vmem %s3, 64
      %v1060 = vld [vmem:[%s1059] sm:$0xf]
      %v1061 = vld [vmem:[%s1059 + $0x4] sm:$0xf]
      %v1062 = vld [vmem:[%s1059 + $0x8] sm:$0xf]
      %v1063 = vld [vmem:[%s1059 + $0xc] sm:$0xf]
      %v1064 = vld [vmem:[%s1059 + $0x10] sm:$0xf]
      %v1065 = vld [vmem:[%s1059 + $0x14] sm:$0xf]
      %v1066 = vld [vmem:[%s1059 + $0x18] sm:$0xf]
      %v1067 = vld [vmem:[%s1059 + $0x1c] sm:$0xf]
      %v1068 = vld [vmem:[%s1059 + $0x20] sm:$0xf]
      %v1069 = vld [vmem:[%s1059 + $0x24] sm:$0xf]
      %v1070 = vld [vmem:[%s1059 + $0x28] sm:$0xf]
      %v1071 = vld [vmem:[%s1059 + $0x2c] sm:$0xf]
      %v1072 = vld [vmem:[%s1059 + $0x30] sm:$0xf]
      %v1073 = vld [vmem:[%s1059 + $0x34] sm:$0xf]
      %v1074 = vld [vmem:[%s1059 + $0x38] sm:$0xf]
      %v1075 = vld [vmem:[%s1059 + $0x3c] sm:$0xf]
      %v1076 = vld [vmem:[%s4 + $0x1] sm:$0x1]
      %v1077 = vlaneseq
      %v1078 = vshrl.u32 %v1077, 7
      %v1079 = vsub.s32 0, %v1078
      %v1080 = vrot.slane %v1076, %v1079
      %v1097 = vunpack.c.l.b16 %v1060
      %v1098 = vunpack.c.l.b16 %v1061
      %v1099 = vunpack.c.l.b16 %v1062
      %v1100 = vunpack.c.l.b16 %v1063
      %v1101 = vunpack.c.l.b16 %v1064
      %v1102 = vunpack.c.l.b16 %v1065
      %v1103 = vunpack.c.l.b16 %v1066
      %v1104 = vunpack.c.l.b16 %v1067
      %v1105 = vunpack.c.l.b16 %v1068
      %v1106 = vunpack.c.l.b16 %v1069
      %v1107 = vunpack.c.l.b16 %v1070
      %v1108 = vunpack.c.l.b16 %v1071
      %v1109 = vunpack.c.l.b16 %v1072
      %v1110 = vunpack.c.l.b16 %v1073
      %v1111 = vunpack.c.l.b16 %v1074
      %v1112 = vunpack.c.l.b16 %v1075
      %v1113 = vpack.c.b16 %v1098, %v1097
      %v1114 = vpack.c.b16 %v1100, %v1099
      %v1115 = vpack.c.b16 %v1102, %v1101
      %v1116 = vpack.c.b16 %v1104, %v1103
      %v1117 = vpack.c.b16 %v1106, %v1105
      %v1118 = vpack.c.b16 %v1108, %v1107
      %v1119 = vpack.c.b16 %v1110, %v1109
      %v1120 = vpack.c.b16 %v1112, %v1111
      %1129 = vmatprep.subr.bf16.mxu0 0
      %1130 = vmatpush1.bf16.msra.mxu0 %v1113
      %1131 = vmatprep.subr.bf16.mxu0 0
      %1132 = vmatpush1.bf16.msra.mxu0 %v1114
      %1133 = vmatprep.subr.bf16.mxu0 0
      %1134 = vmatpush1.bf16.msra.mxu0 %v1115
      %1135 = vmatprep.subr.bf16.mxu0 0
      %1136 = vmatpush1.bf16.msra.mxu0 %v1116
      %1137 = vmatprep.subr.bf16.mxu0 0
      %1138 = vmatpush1.bf16.msra.mxu0 %v1117
      %1139 = vmatprep.subr.bf16.mxu0 0
      %1140 = vmatpush1.bf16.msra.mxu0 %v1118
      %1141 = vmatprep.subr.bf16.mxu0 0
      %1142 = vmatpush1.bf16.msra.mxu0 %v1119
      %1143 = vmatprep.subr.bf16.mxu0 0
      %1144 = vmatpush1.bf16.msra.mxu0 %v1120
      %1145 = vmatprep.subr.bf16.mxu0 0
      %1146 = vmatpush1.bf16.msra.mxu0 0
      %1147 = vmatprep.subr.bf16.mxu0 0
      %1148 = vmatpush1.bf16.msra.mxu0 0
      %1149 = vmatprep.subr.bf16.mxu0 0
      %1150 = vmatpush1.bf16.msra.mxu0 0
      %1151 = vmatprep.subr.bf16.mxu0 0
      %1152 = vmatpush1.bf16.msra.mxu0 0
      %1153 = vmatprep.subr.bf16.mxu0 0
      %1154 = vmatpush1.bf16.msra.mxu0 0
      %1155 = vmatprep.subr.bf16.mxu0 0
      %1156 = vmatpush1.bf16.msra.mxu0 0
      %1157 = vmatprep.subr.bf16.mxu0 0
      %1158 = vmatpush1.bf16.msra.mxu0 0
      %1159 = vmatprep.subr.bf16.mxu0 0
      %1160 = vmatpush1.bf16.msra.mxu0 0
      %1161 = vmatprep.mubr.bf16.mxu0 0
      %1162 = vmatmul.mubr.bf16.gmra.mrb[0].mxu0 %v1043
      %v1163 = vpop.f32.mrb[0].mxu0
      %v1164 = vadd.f32 %v1080, %v1163
      %v1165 = vpop.f32.mrb[0].mxu0
      %v1166 = vpop.f32.mrb[0].mxu0
      %v1167 = vadd.f32 %v1080, %v1166
      %v1168 = vpop.f32.mrb[0].mxu0
      %1169 = vmatprep.mubr.bf16.mxu0 0
      %1170 = vmatmul.mubr.bf16.gmra.mrb[0].mxu0 %v1044
      %v1171 = vpop.f32.mrb[0].mxu0
      %v1172 = vadd.f32 %v1080, %v1171
      %v1173 = vpop.f32.mrb[0].mxu0
      %v1174 = vpop.f32.mrb[0].mxu0
      %v1175 = vadd.f32 %v1080, %v1174
      %v1176 = vpop.f32.mrb[0].mxu0
      %1177 = vmatprep.mubr.bf16.mxu0 0
      %1178 = vmatmul.mubr.bf16.gmra.mrb[0].mxu0 %v1045
      %v1179 = vpop.f32.mrb[0].mxu0
      %v1180 = vadd.f32 %v1080, %v1179
      %v1181 = vpop.f32.mrb[0].mxu0
      %v1182 = vpop.f32.mrb[0].mxu0
      %v1183 = vadd.f32 %v1080, %v1182
      %v1184 = vpop.f32.mrb[0].mxu0
      %1185 = vmatprep.mubr.bf16.mxu0 0
      %1186 = vmatmul.mubr.bf16.gmra.mrb[0].mxu0 %v1046
      %v1187 = vpop.f32.mrb[0].mxu0
      %v1188 = vadd.f32 %v1080, %v1187
      %v1189 = vpop.f32.mrb[0].mxu0
      %v1190 = vpop.f32.mrb[0].mxu0
      %v1191 = vadd.f32 %v1080, %v1190
      %v1192 = vpop.f32.mrb[0].mxu0
      %1193 = vmatprep.mubr.bf16.mxu0 0
      %1194 = vmatmul.mubr.bf16.gmra.mrb[0].mxu0 %v1047
      %v1195 = vpop.f32.mrb[0].mxu0
      %v1196 = vadd.f32 %v1080, %v1195
      %v1197 = vpop.f32.mrb[0].mxu0
      %v1198 = vpop.f32.mrb[0].mxu0
      %v1199 = vadd.f32 %v1080, %v1198
      %v1200 = vpop.f32.mrb[0].mxu0
      %1201 = vmatprep.mubr.bf16.mxu0 0
      %1202 = vmatmul.mubr.bf16.gmra.mrb[0].mxu0 %v1048
      %v1203 = vpop.f32.mrb[0].mxu0
      %v1204 = vadd.f32 %v1080, %v1203
      %v1205 = vpop.f32.mrb[0].mxu0
      %v1206 = vpop.f32.mrb[0].mxu0
      %v1207 = vadd.f32 %v1080, %v1206
      %v1208 = vpop.f32.mrb[0].mxu0
      %1209 = vmatprep.mubr.bf16.mxu0 0
      %1210 = vmatmul.mubr.bf16.gmra.mrb[0].mxu0 %v1049
      %v1211 = vpop.f32.mrb[0].mxu0
      %v1212 = vadd.f32 %v1080, %v1211
      %v1213 = vpop.f32.mrb[0].mxu0
      %v1214 = vpop.f32.mrb[0].mxu0
      %v1215 = vadd.f32 %v1080, %v1214
      %v1216 = vpop.f32.mrb[0].mxu0
      %1217 = vmatprep.mubr.bf16.mxu0 0
      %1218 = vmatmul.mubr.bf16.gmra.mrb[0].mxu0 %v1050
      %v1219 = vpop.f32.mrb[0].mxu0
      %v1220 = vadd.f32 %v1080, %v1219
      %v1221 = vpop.f32.mrb[0].mxu0
      %v1222 = vpop.f32.mrb[0].mxu0
      %v1223 = vadd.f32 %v1080, %v1222
      %v1224 = vpop.f32.mrb[0].mxu0
      %1225 = vmatprep.mubr.bf16.mxu0 0
      %1226 = vmatmul.mubr.bf16.gmra.mrb[0].mxu0 %v1051
      %v1227 = vpop.f32.mrb[0].mxu0
      %v1228 = vadd.f32 %v1080, %v1227
      %v1229 = vpop.f32.mrb[0].mxu0
      %v1230 = vpop.f32.mrb[0].mxu0
      %v1231 = vadd.f32 %v1080, %v1230
      %v1232 = vpop.f32.mrb[0].mxu0
      %1233 = vmatprep.mubr.bf16.mxu0 0
      %1234 = vmatmul.mubr.bf16.gmra.mrb[0].mxu0 %v1052
      %v1235 = vpop.f32.mrb[0].mxu0
      %v1236 = vadd.f32 %v1080, %v1235
      %v1237 = vpop.f32.mrb[0].mxu0
      %v1238 = vpop.f32.mrb[0].mxu0
      %v1239 = vadd.f32 %v1080, %v1238
      %v1240 = vpop.f32.mrb[0].mxu0
      %1241 = vmatprep.mubr.bf16.mxu0 0
      %1242 = vmatmul.mubr.bf16.gmra.mrb[0].mxu0 %v1053
      %v1243 = vpop.f32.mrb[0].mxu0
      %v1244 = vadd.f32 %v1080, %v1243
      %v1245 = vpop.f32.mrb[0].mxu0
      %v1246 = vpop.f32.mrb[0].mxu0
      %v1247 = vadd.f32 %v1080, %v1246
      %v1248 = vpop.f32.mrb[0].mxu0
      %1249 = vmatprep.mubr.bf16.mxu0 0
      %1250 = vmatmul.mubr.bf16.gmra.mrb[0].mxu0 %v1054
      %v1251 = vpop.f32.mrb[0].mxu0
      %v1252 = vadd.f32 %v1080, %v1251
      %v1253 = vpop.f32.mrb[0].mxu0
      %v1254 = vpop.f32.mrb[0].mxu0
      %v1255 = vadd.f32 %v1080, %v1254
      %v1256 = vpop.f32.mrb[0].mxu0
      %1257 = vmatprep.mubr.bf16.mxu0 0
      %1258 = vmatmul.mubr.bf16.gmra.mrb[0].mxu0 %v1055
      %v1259 = vpop.f32.mrb[0].mxu0
      %v1260 = vadd.f32 %v1080, %v1259
      %v1261 = vpop.f32.mrb[0].mxu0
      %v1262 = vpop.f32.mrb[0].mxu0
      %v1263 = vadd.f32 %v1080, %v1262
      %v1264 = vpop.f32.mrb[0].mxu0
      %1265 = vmatprep.mubr.bf16.mxu0 0
      %1266 = vmatmul.mubr.bf16.gmra.mrb[0].mxu0 %v1056
      %v1267 = vpop.f32.mrb[0].mxu0
      %v1268 = vadd.f32 %v1080, %v1267
      %v1269 = vpop.f32.mrb[0].mxu0
      %v1270 = vpop.f32.mrb[0].mxu0
      %v1271 = vadd.f32 %v1080, %v1270
      %v1272 = vpop.f32.mrb[0].mxu0
      %1273 = vmatprep.mubr.bf16.mxu0 0
      %1274 = vmatmul.mubr.bf16.gmra.mrb[0].mxu0 %v1057
      %v1275 = vpop.f32.mrb[0].mxu0
      %v1276 = vadd.f32 %v1080, %v1275
      %v1277 = vpop.f32.mrb[0].mxu0
      %v1278 = vpop.f32.mrb[0].mxu0
      %v1279 = vadd.f32 %v1080, %v1278
      %v1280 = vpop.f32.mrb[0].mxu0
      %1281 = vmatprep.mubr.bf16.mxu0 0
      %1282 = vmatmul.mubr.bf16.gmra.mrb[0].mxu0 %v1058
      %v1283 = vpop.f32.mrb[0].mxu0
      %v1284 = vadd.f32 %v1080, %v1283
      %v1285 = vpop.f32.mrb[0].mxu0
      %v1286 = vpop.f32.mrb[0].mxu0
      %v1287 = vadd.f32 %v1080, %v1286
      %v1288 = vpop.f32.mrb[0].mxu0
      %1289 = vdwg.mxu0
      %v1290 = vmul.f32 %v1164, 0.2
      %v1291 = vmul.f32 %v1167, 0.2
      %v1292 = vmul.f32 %v1172, 0.2
      %v1293 = vmul.f32 %v1175, 0.2
      %v1294 = vmul.f32 %v1180, 0.2
      %v1295 = vmul.f32 %v1183, 0.2
      %v1296 = vmul.f32 %v1188, 0.2
      %v1297 = vmul.f32 %v1191, 0.2
      %v1298 = vmul.f32 %v1196, 0.2
      %v1299 = vmul.f32 %v1199, 0.2
      %v1300 = vmul.f32 %v1204, 0.2
      %v1301 = vmul.f32 %v1207, 0.2
      %v1302 = vmul.f32 %v1212, 0.2
      %v1303 = vmul.f32 %v1215, 0.2
      %v1304 = vmul.f32 %v1220, 0.2
      %v1305 = vmul.f32 %v1223, 0.2
      %v1306 = vmul.f32 %v1228, 0.2
      %v1307 = vmul.f32 %v1231, 0.2
      %v1308 = vmul.f32 %v1236, 0.2
      %v1309 = vmul.f32 %v1239, 0.2
      %v1310 = vmul.f32 %v1244, 0.2
      %v1311 = vmul.f32 %v1247, 0.2
      %v1312 = vmul.f32 %v1252, 0.2
      %v1313 = vmul.f32 %v1255, 0.2
      %v1314 = vmul.f32 %v1260, 0.2
      %v1315 = vmul.f32 %v1263, 0.2
      %v1316 = vmul.f32 %v1268, 0.2
      %v1317 = vmul.f32 %v1271, 0.2
      %v1318 = vmul.f32 %v1276, 0.2
      %v1319 = vmul.f32 %v1279, 0.2
      %v1320 = vmul.f32 %v1284, 0.2
      %v1321 = vmul.f32 %v1287, 0.2
      %v1322 = vmax.f32 %v1164, %v1290
      %v1323 = vmax.f32 %v1167, %v1291
      %v1324 = vmax.f32 %v1172, %v1292
      %v1325 = vmax.f32 %v1175, %v1293
      %v1326 = vmax.f32 %v1180, %v1294
      %v1327 = vmax.f32 %v1183, %v1295
      %v1328 = vmax.f32 %v1188, %v1296
      %v1329 = vmax.f32 %v1191, %v1297
      %v1330 = vmax.f32 %v1196, %v1298
      %v1331 = vmax.f32 %v1199, %v1299
      %v1332 = vmax.f32 %v1204, %v1300
      %v1333 = vmax.f32 %v1207, %v1301
      %v1334 = vmax.f32 %v1212, %v1302
      %v1335 = vmax.f32 %v1215, %v1303
      %v1336 = vmax.f32 %v1220, %v1304
      %v1337 = vmax.f32 %v1223, %v1305
      %v1338 = vmax.f32 %v1228, %v1306
      %v1339 = vmax.f32 %v1231, %v1307
      %v1340 = vmax.f32 %v1236, %v1308
      %v1341 = vmax.f32 %v1239, %v1309
      %v1342 = vmax.f32 %v1244, %v1310
      %v1343 = vmax.f32 %v1247, %v1311
      %v1344 = vmax.f32 %v1252, %v1312
      %v1345 = vmax.f32 %v1255, %v1313
      %v1346 = vmax.f32 %v1260, %v1314
      %v1347 = vmax.f32 %v1263, %v1315
      %v1348 = vmax.f32 %v1268, %v1316
      %v1349 = vmax.f32 %v1271, %v1317
      %v1350 = vmax.f32 %v1276, %v1318
      %v1351 = vmax.f32 %v1279, %v1319
      %v1352 = vmax.f32 %v1284, %v1320
      %v1353 = vmax.f32 %v1287, %v1321
      %v1354 = vpack.c.bf16 %v672, %v670
      %v1355 = vpack.c.bf16 %v676, %v674
      %v1356 = vpack.c.bf16 %v680, %v678
      %v1357 = vpack.c.bf16 %v684, %v682
      %v1358 = vpack.c.bf16 %v688, %v686
      %v1359 = vpack.c.bf16 %v692, %v690
      %v1360 = vpack.c.bf16 %v696, %v694
      %v1361 = vpack.c.bf16 %v700, %v698
      %v1362 = vpack.c.bf16 %v704, %v702
      %v1363 = vpack.c.bf16 %v708, %v706
      %v1364 = vpack.c.bf16 %v712, %v710
      %v1365 = vpack.c.bf16 %v716, %v714
      %v1366 = vpack.c.bf16 %v720, %v718
      %v1367 = vpack.c.bf16 %v724, %v722
      %v1368 = vpack.c.bf16 %v728, %v726
      %v1369 = vpack.c.bf16 %v732, %v730
      %s1370 = scalar_lea.vmem %s3, 128
      %v1371 = vld [vmem:[%s1370] sm:$0xf]
      %v1372 = vld [vmem:[%s1370 + $0x4] sm:$0xf]
      %v1373 = vld [vmem:[%s1370 + $0x8] sm:$0xf]
      %v1374 = vld [vmem:[%s1370 + $0xc] sm:$0xf]
      %v1375 = vld [vmem:[%s1370 + $0x10] sm:$0xf]
      %v1376 = vld [vmem:[%s1370 + $0x14] sm:$0xf]
      %v1377 = vld [vmem:[%s1370 + $0x18] sm:$0xf]
      %v1378 = vld [vmem:[%s1370 + $0x1c] sm:$0xf]
      %v1379 = vld [vmem:[%s1370 + $0x20] sm:$0xf]
      %v1380 = vld [vmem:[%s1370 + $0x24] sm:$0xf]
      %v1381 = vld [vmem:[%s1370 + $0x28] sm:$0xf]
      %v1382 = vld [vmem:[%s1370 + $0x2c] sm:$0xf]
      %v1383 = vld [vmem:[%s1370 + $0x30] sm:$0xf]
      %v1384 = vld [vmem:[%s1370 + $0x34] sm:$0xf]
      %v1385 = vld [vmem:[%s1370 + $0x38] sm:$0xf]
      %v1386 = vld [vmem:[%s1370 + $0x3c] sm:$0xf]
      %v1387 = vld [vmem:[%s4 + $0x2] sm:$0x1]
      %v1388 = vlaneseq
      %v1389 = vshrl.u32 %v1388, 7
      %v1390 = vsub.s32 0, %v1389
      %v1391 = vrot.slane %v1387, %v1390
      %v1408 = vunpack.c.l.b16 %v1371
      %v1409 = vunpack.c.l.b16 %v1372
      %v1410 = vunpack.c.l.b16 %v1373
      %v1411 = vunpack.c.l.b16 %v1374
      %v1412 = vunpack.c.l.b16 %v1375
      %v1413 = vunpack.c.l.b16 %v1376
      %v1414 = vunpack.c.l.b16 %v1377
      %v1415 = vunpack.c.l.b16 %v1378
      %v1416 = vunpack.c.l.b16 %v1379
      %v1417 = vunpack.c.l.b16 %v1380
      %v1418 = vunpack.c.l.b16 %v1381
      %v1419 = vunpack.c.l.b16 %v1382
      %v1420 = vunpack.c.l.b16 %v1383
      %v1421 = vunpack.c.l.b16 %v1384
      %v1422 = vunpack.c.l.b16 %v1385
      %v1423 = vunpack.c.l.b16 %v1386
      %v1424 = vpack.c.b16 %v1409, %v1408
      %v1425 = vpack.c.b16 %v1411, %v1410
      %v1426 = vpack.c.b16 %v1413, %v1412
      %v1427 = vpack.c.b16 %v1415, %v1414
      %v1428 = vpack.c.b16 %v1417, %v1416
      %v1429 = vpack.c.b16 %v1419, %v1418
      %v1430 = vpack.c.b16 %v1421, %v1420
      %v1431 = vpack.c.b16 %v1423, %v1422
      %1440 = vmatprep.subr.bf16.mxu0 0
      %1441 = vmatpush1.bf16.msra.mxu0 %v1424
      %1442 = vmatprep.subr.bf16.mxu0 0
      %1443 = vmatpush1.bf16.msra.mxu0 %v1425
      %1444 = vmatprep.subr.bf16.mxu0 0
      %1445 = vmatpush1.bf16.msra.mxu0 %v1426
      %1446 = vmatprep.subr.bf16.mxu0 0
      %1447 = vmatpush1.bf16.msra.mxu0 %v1427
      %1448 = vmatprep.subr.bf16.mxu0 0
      %1449 = vmatpush1.bf16.msra.mxu0 %v1428
      %1450 = vmatprep.subr.bf16.mxu0 0
      %1451 = vmatpush1.bf16.msra.mxu0 %v1429
      %1452 = vmatprep.subr.bf16.mxu0 0
      %1453 = vmatpush1.bf16.msra.mxu0 %v1430
      %1454 = vmatprep.subr.bf16.mxu0 0
      %1455 = vmatpush1.bf16.msra.mxu0 %v1431
      %1456 = vmatprep.subr.bf16.mxu0 0
      %1457 = vmatpush1.bf16.msra.mxu0 0
      %1458 = vmatprep.subr.bf16.mxu0 0
      %1459 = vmatpush1.bf16.msra.mxu0 0
      %1460 = vmatprep.subr.bf16.mxu0 0
      %1461 = vmatpush1.bf16.msra.mxu0 0
      %1462 = vmatprep.subr.bf16.mxu0 0
      %1463 = vmatpush1.bf16.msra.mxu0 0
      %1464 = vmatprep.subr.bf16.mxu0 0
      %1465 = vmatpush1.bf16.msra.mxu0 0
      %1466 = vmatprep.subr.bf16.mxu0 0
      %1467 = vmatpush1.bf16.msra.mxu0 0
      %1468 = vmatprep.subr.bf16.mxu0 0
      %1469 = vmatpush1.bf16.msra.mxu0 0
      %1470 = vmatprep.subr.bf16.mxu0 0
      %1471 = vmatpush1.bf16.msra.mxu0 0
      %1472 = vmatprep.mubr.bf16.mxu0 0
      %1473 = vmatmul.mubr.bf16.gmra.mrb[0].mxu0 %v1354
      %v1474 = vpop.f32.mrb[0].mxu0
      %v1475 = vadd.f32 %v1391, %v1474
      %v1476 = vpop.f32.mrb[0].mxu0
      %v1477 = vpop.f32.mrb[0].mxu0
      %v1478 = vadd.f32 %v1391, %v1477
      %v1479 = vpop.f32.mrb[0].mxu0
      %1480 = vmatprep.mubr.bf16.mxu0 0
      %1481 = vmatmul.mubr.bf16.gmra.mrb[0].mxu0 %v1355
      %v1482 = vpop.f32.mrb[0].mxu0
      %v1483 = vadd.f32 %v1391, %v1482
      %v1484 = vpop.f32.mrb[0].mxu0
      %v1485 = vpop.f32.mrb[0].mxu0
      %v1486 = vadd.f32 %v1391, %v1485
      %v1487 = vpop.f32.mrb[0].mxu0
      %1488 = vmatprep.mubr.bf16.mxu0 0
      %1489 = vmatmul.mubr.bf16.gmra.mrb[0].mxu0 %v1356
      %v1490 = vpop.f32.mrb[0].mxu0
      %v1491 = vadd.f32 %v1391, %v1490
      %v1492 = vpop.f32.mrb[0].mxu0
      %v1493 = vpop.f32.mrb[0].mxu0
      %v1494 = vadd.f32 %v1391, %v1493
      %v1495 = vpop.f32.mrb[0].mxu0
      %1496 = vmatprep.mubr.bf16.mxu0 0
      %1497 = vmatmul.mubr.bf16.gmra.mrb[0].mxu0 %v1357
      %v1498 = vpop.f32.mrb[0].mxu0
      %v1499 = vadd.f32 %v1391, %v1498
      %v1500 = vpop.f32.mrb[0].mxu0
      %v1501 = vpop.f32.mrb[0].mxu0
      %v1502 = vadd.f32 %v1391, %v1501
      %v1503 = vpop.f32.mrb[0].mxu0
      %1504 = vmatprep.mubr.bf16.mxu0 0
      %1505 = vmatmul.mubr.bf16.gmra.mrb[0].mxu0 %v1358
      %v1506 = vpop.f32.mrb[0].mxu0
      %v1507 = vadd.f32 %v1391, %v1506
      %v1508 = vpop.f32.mrb[0].mxu0
      %v1509 = vpop.f32.mrb[0].mxu0
      %v1510 = vadd.f32 %v1391, %v1509
      %v1511 = vpop.f32.mrb[0].mxu0
      %1512 = vmatprep.mubr.bf16.mxu0 0
      %1513 = vmatmul.mubr.bf16.gmra.mrb[0].mxu0 %v1359
      %v1514 = vpop.f32.mrb[0].mxu0
      %v1515 = vadd.f32 %v1391, %v1514
      %v1516 = vpop.f32.mrb[0].mxu0
      %v1517 = vpop.f32.mrb[0].mxu0
      %v1518 = vadd.f32 %v1391, %v1517
      %v1519 = vpop.f32.mrb[0].mxu0
      %1520 = vmatprep.mubr.bf16.mxu0 0
      %1521 = vmatmul.mubr.bf16.gmra.mrb[0].mxu0 %v1360
      %v1522 = vpop.f32.mrb[0].mxu0
      %v1523 = vadd.f32 %v1391, %v1522
      %v1524 = vpop.f32.mrb[0].mxu0
      %v1525 = vpop.f32.mrb[0].mxu0
      %v1526 = vadd.f32 %v1391, %v1525
      %v1527 = vpop.f32.mrb[0].mxu0
      %1528 = vmatprep.mubr.bf16.mxu0 0
      %1529 = vmatmul.mubr.bf16.gmra.mrb[0].mxu0 %v1361
      %v1530 = vpop.f32.mrb[0].mxu0
      %v1531 = vadd.f32 %v1391, %v1530
      %v1532 = vpop.f32.mrb[0].mxu0
      %v1533 = vpop.f32.mrb[0].mxu0
      %v1534 = vadd.f32 %v1391, %v1533
      %v1535 = vpop.f32.mrb[0].mxu0
      %1536 = vmatprep.mubr.bf16.mxu0 0
      %1537 = vmatmul.mubr.bf16.gmra.mrb[0].mxu0 %v1362
      %v1538 = vpop.f32.mrb[0].mxu0
      %v1539 = vadd.f32 %v1391, %v1538
      %v1540 = vpop.f32.mrb[0].mxu0
      %v1541 = vpop.f32.mrb[0].mxu0
      %v1542 = vadd.f32 %v1391, %v1541
      %v1543 = vpop.f32.mrb[0].mxu0
      %1544 = vmatprep.mubr.bf16.mxu0 0
      %1545 = vmatmul.mubr.bf16.gmra.mrb[0].mxu0 %v1363
      %v1546 = vpop.f32.mrb[0].mxu0
      %v1547 = vadd.f32 %v1391, %v1546
      %v1548 = vpop.f32.mrb[0].mxu0
      %v1549 = vpop.f32.mrb[0].mxu0
      %v1550 = vadd.f32 %v1391, %v1549
      %v1551 = vpop.f32.mrb[0].mxu0
      %1552 = vmatprep.mubr.bf16.mxu0 0
      %1553 = vmatmul.mubr.bf16.gmra.mrb[0].mxu0 %v1364
      %v1554 = vpop.f32.mrb[0].mxu0
      %v1555 = vadd.f32 %v1391, %v1554
      %v1556 = vpop.f32.mrb[0].mxu0
      %v1557 = vpop.f32.mrb[0].mxu0
      %v1558 = vadd.f32 %v1391, %v1557
      %v1559 = vpop.f32.mrb[0].mxu0
      %1560 = vmatprep.mubr.bf16.mxu0 0
      %1561 = vmatmul.mubr.bf16.gmra.mrb[0].mxu0 %v1365
      %v1562 = vpop.f32.mrb[0].mxu0
      %v1563 = vadd.f32 %v1391, %v1562
      %v1564 = vpop.f32.mrb[0].mxu0
      %v1565 = vpop.f32.mrb[0].mxu0
      %v1566 = vadd.f32 %v1391, %v1565
      %v1567 = vpop.f32.mrb[0].mxu0
      %1568 = vmatprep.mubr.bf16.mxu0 0
      %1569 = vmatmul.mubr.bf16.gmra.mrb[0].mxu0 %v1366
      %v1570 = vpop.f32.mrb[0].mxu0
      %v1571 = vadd.f32 %v1391, %v1570
      %v1572 = vpop.f32.mrb[0].mxu0
      %v1573 = vpop.f32.mrb[0].mxu0
      %v1574 = vadd.f32 %v1391, %v1573
      %v1575 = vpop.f32.mrb[0].mxu0
      %1576 = vmatprep.mubr.bf16.mxu0 0
      %1577 = vmatmul.mubr.bf16.gmra.mrb[0].mxu0 %v1367
      %v1578 = vpop.f32.mrb[0].mxu0
      %v1579 = vadd.f32 %v1391, %v1578
      %v1580 = vpop.f32.mrb[0].mxu0
      %v1581 = vpop.f32.mrb[0].mxu0
      %v1582 = vadd.f32 %v1391, %v1581
      %v1583 = vpop.f32.mrb[0].mxu0
      %1584 = vmatprep.mubr.bf16.mxu0 0
      %1585 = vmatmul.mubr.bf16.gmra.mrb[0].mxu0 %v1368
      %v1586 = vpop.f32.mrb[0].mxu0
      %v1587 = vadd.f32 %v1391, %v1586
      %v1588 = vpop.f32.mrb[0].mxu0
      %v1589 = vpop.f32.mrb[0].mxu0
      %v1590 = vadd.f32 %v1391, %v1589
      %v1591 = vpop.f32.mrb[0].mxu0
      %1592 = vmatprep.mubr.bf16.mxu0 0
      %1593 = vmatmul.mubr.bf16.gmra.mrb[0].mxu0 %v1369
      %v1594 = vpop.f32.mrb[0].mxu0
      %v1595 = vadd.f32 %v1391, %v1594
      %v1596 = vpop.f32.mrb[0].mxu0
      %v1597 = vpop.f32.mrb[0].mxu0
      %v1598 = vadd.f32 %v1391, %v1597
      %v1599 = vpop.f32.mrb[0].mxu0
      %1600 = vdwg.mxu0
      %v1601 = vmul.f32 %v1475, 0.2
      %v1602 = vmul.f32 %v1478, 0.2
      %v1603 = vmul.f32 %v1483, 0.2
      %v1604 = vmul.f32 %v1486, 0.2
      %v1605 = vmul.f32 %v1491, 0.2
      %v1606 = vmul.f32 %v1494, 0.2
      %v1607 = vmul.f32 %v1499, 0.2
      %v1608 = vmul.f32 %v1502, 0.2
      %v1609 = vmul.f32 %v1507, 0.2
      %v1610 = vmul.f32 %v1510, 0.2
      %v1611 = vmul.f32 %v1515, 0.2
      %v1612 = vmul.f32 %v1518, 0.2
      %v1613 = vmul.f32 %v1523, 0.2
      %v1614 = vmul.f32 %v1526, 0.2
      %v1615 = vmul.f32 %v1531, 0.2
      %v1616 = vmul.f32 %v1534, 0.2
      %v1617 = vmul.f32 %v1539, 0.2
      %v1618 = vmul.f32 %v1542, 0.2
      %v1619 = vmul.f32 %v1547, 0.2
      %v1620 = vmul.f32 %v1550, 0.2
      %v1621 = vmul.f32 %v1555, 0.2
      %v1622 = vmul.f32 %v1558, 0.2
      %v1623 = vmul.f32 %v1563, 0.2
      %v1624 = vmul.f32 %v1566, 0.2
      %v1625 = vmul.f32 %v1571, 0.2
      %v1626 = vmul.f32 %v1574, 0.2
      %v1627 = vmul.f32 %v1579, 0.2
      %v1628 = vmul.f32 %v1582, 0.2
      %v1629 = vmul.f32 %v1587, 0.2
      %v1630 = vmul.f32 %v1590, 0.2
      %v1631 = vmul.f32 %v1595, 0.2
      %v1632 = vmul.f32 %v1598, 0.2
      %v1633 = vmax.f32 %v1475, %v1601
      %v1634 = vmax.f32 %v1478, %v1602
      %v1635 = vmax.f32 %v1483, %v1603
      %v1636 = vmax.f32 %v1486, %v1604
      %v1637 = vmax.f32 %v1491, %v1605
      %v1638 = vmax.f32 %v1494, %v1606
      %v1639 = vmax.f32 %v1499, %v1607
      %v1640 = vmax.f32 %v1502, %v1608
      %v1641 = vmax.f32 %v1507, %v1609
      %v1642 = vmax.f32 %v1510, %v1610
      %v1643 = vmax.f32 %v1515, %v1611
      %v1644 = vmax.f32 %v1518, %v1612
      %v1645 = vmax.f32 %v1523, %v1613
      %v1646 = vmax.f32 %v1526, %v1614
      %v1647 = vmax.f32 %v1531, %v1615
      %v1648 = vmax.f32 %v1534, %v1616
      %v1649 = vmax.f32 %v1539, %v1617
      %v1650 = vmax.f32 %v1542, %v1618
      %v1651 = vmax.f32 %v1547, %v1619
      %v1652 = vmax.f32 %v1550, %v1620
      %v1653 = vmax.f32 %v1555, %v1621
      %v1654 = vmax.f32 %v1558, %v1622
      %v1655 = vmax.f32 %v1563, %v1623
      %v1656 = vmax.f32 %v1566, %v1624
      %v1657 = vmax.f32 %v1571, %v1625
      %v1658 = vmax.f32 %v1574, %v1626
      %v1659 = vmax.f32 %v1579, %v1627
      %v1660 = vmax.f32 %v1582, %v1628
      %v1661 = vmax.f32 %v1587, %v1629
      %v1662 = vmax.f32 %v1590, %v1630
      %v1663 = vmax.f32 %v1595, %v1631
      %v1664 = vmax.f32 %v1598, %v1632
      %v1665 = vpack.c.bf16 %v1634, %v1633
      %v1666 = vpack.c.bf16 %v1636, %v1635
      %v1667 = vpack.c.bf16 %v1638, %v1637
      %v1668 = vpack.c.bf16 %v1640, %v1639
      %v1669 = vpack.c.bf16 %v1642, %v1641
      %v1670 = vpack.c.bf16 %v1644, %v1643
      %v1671 = vpack.c.bf16 %v1646, %v1645
      %v1672 = vpack.c.bf16 %v1648, %v1647
      %v1673 = vpack.c.bf16 %v1650, %v1649
      %v1674 = vpack.c.bf16 %v1652, %v1651
      %v1675 = vpack.c.bf16 %v1654, %v1653
      %v1676 = vpack.c.bf16 %v1656, %v1655
      %v1677 = vpack.c.bf16 %v1658, %v1657
      %v1678 = vpack.c.bf16 %v1660, %v1659
      %v1679 = vpack.c.bf16 %v1662, %v1661
      %v1680 = vpack.c.bf16 %v1664, %v1663
      %s1681 = scalar_lea.vmem %s3, 192
      %v1682 = vld [vmem:[%s1681] sm:$0xf]
      %v1683 = vld [vmem:[%s1681 + $0x4] sm:$0xf]
      %v1684 = vld [vmem:[%s1681 + $0x8] sm:$0xf]
      %v1685 = vld [vmem:[%s1681 + $0xc] sm:$0xf]
      %v1686 = vld [vmem:[%s1681 + $0x10] sm:$0xf]
      %v1687 = vld [vmem:[%s1681 + $0x14] sm:$0xf]
      %v1688 = vld [vmem:[%s1681 + $0x18] sm:$0xf]
      %v1689 = vld [vmem:[%s1681 + $0x1c] sm:$0xf]
      %v1690 = vld [vmem:[%s1681 + $0x20] sm:$0xf]
      %v1691 = vld [vmem:[%s1681 + $0x24] sm:$0xf]
      %v1692 = vld [vmem:[%s1681 + $0x28] sm:$0xf]
      %v1693 = vld [vmem:[%s1681 + $0x2c] sm:$0xf]
      %v1694 = vld [vmem:[%s1681 + $0x30] sm:$0xf]
      %v1695 = vld [vmem:[%s1681 + $0x34] sm:$0xf]
      %v1696 = vld [vmem:[%s1681 + $0x38] sm:$0xf]
      %v1697 = vld [vmem:[%s1681 + $0x3c] sm:$0xf]
      %v1698 = vld [vmem:[%s4 + $0x3] sm:$0x1]
      %v1699 = vlaneseq
      %v1700 = vshrl.u32 %v1699, 7
      %v1701 = vsub.s32 0, %v1700
      %v1702 = vrot.slane %v1698, %v1701
      %v1719 = vunpack.c.l.b16 %v1682
      %v1720 = vunpack.c.l.b16 %v1683
      %v1721 = vunpack.c.l.b16 %v1684
      %v1722 = vunpack.c.l.b16 %v1685
      %v1723 = vunpack.c.l.b16 %v1686
      %v1724 = vunpack.c.l.b16 %v1687
      %v1725 = vunpack.c.l.b16 %v1688
      %v1726 = vunpack.c.l.b16 %v1689
      %v1727 = vunpack.c.l.b16 %v1690
      %v1728 = vunpack.c.l.b16 %v1691
      %v1729 = vunpack.c.l.b16 %v1692
      %v1730 = vunpack.c.l.b16 %v1693
      %v1731 = vunpack.c.l.b16 %v1694
      %v1732 = vunpack.c.l.b16 %v1695
      %v1733 = vunpack.c.l.b16 %v1696
      %v1734 = vunpack.c.l.b16 %v1697
      %v1735 = vpack.c.b16 %v1720, %v1719
      %v1736 = vpack.c.b16 %v1722, %v1721
      %v1737 = vpack.c.b16 %v1724, %v1723
      %v1738 = vpack.c.b16 %v1726, %v1725
      %v1739 = vpack.c.b16 %v1728, %v1727
      %v1740 = vpack.c.b16 %v1730, %v1729
      %v1741 = vpack.c.b16 %v1732, %v1731
      %v1742 = vpack.c.b16 %v1734, %v1733
      %1751 = vmatprep.subr.bf16.mxu0 0
      %1752 = vmatpush1.bf16.msra.mxu0 %v1735
      %1753 = vmatprep.subr.bf16.mxu0 0
      %1754 = vmatpush1.bf16.msra.mxu0 %v1736
      %1755 = vmatprep.subr.bf16.mxu0 0
      %1756 = vmatpush1.bf16.msra.mxu0 %v1737
      %1757 = vmatprep.subr.bf16.mxu0 0
      %1758 = vmatpush1.bf16.msra.mxu0 %v1738
      %1759 = vmatprep.subr.bf16.mxu0 0
      %1760 = vmatpush1.bf16.msra.mxu0 %v1739
      %1761 = vmatprep.subr.bf16.mxu0 0
      %1762 = vmatpush1.bf16.msra.mxu0 %v1740
      %1763 = vmatprep.subr.bf16.mxu0 0
      %1764 = vmatpush1.bf16.msra.mxu0 %v1741
      %1765 = vmatprep.subr.bf16.mxu0 0
      %1766 = vmatpush1.bf16.msra.mxu0 %v1742
      %1767 = vmatprep.subr.bf16.mxu0 0
      %1768 = vmatpush1.bf16.msra.mxu0 0
      %1769 = vmatprep.subr.bf16.mxu0 0
      %1770 = vmatpush1.bf16.msra.mxu0 0
      %1771 = vmatprep.subr.bf16.mxu0 0
      %1772 = vmatpush1.bf16.msra.mxu0 0
      %1773 = vmatprep.subr.bf16.mxu0 0
      %1774 = vmatpush1.bf16.msra.mxu0 0
      %1775 = vmatprep.subr.bf16.mxu0 0
      %1776 = vmatpush1.bf16.msra.mxu0 0
      %1777 = vmatprep.subr.bf16.mxu0 0
      %1778 = vmatpush1.bf16.msra.mxu0 0
      %1779 = vmatprep.subr.bf16.mxu0 0
      %1780 = vmatpush1.bf16.msra.mxu0 0
      %1781 = vmatprep.subr.bf16.mxu0 0
      %1782 = vmatpush1.bf16.msra.mxu0 0
      %1783 = vmatprep.mubr.bf16.mxu0 0
      %1784 = vmatmul.mubr.bf16.gmra.mrb[0].mxu0 %v1665
      %v1785 = vpop.f32.mrb[0].mxu0
      %v1786 = vadd.f32 %v1702, %v1785
      %v1787 = vpop.f32.mrb[0].mxu0
      %v1788 = vpop.f32.mrb[0].mxu0
      %v1789 = vadd.f32 %v1702, %v1788
      %v1790 = vpop.f32.mrb[0].mxu0
      %1791 = vmatprep.mubr.bf16.mxu0 0
      %1792 = vmatmul.mubr.bf16.gmra.mrb[0].mxu0 %v1666
      %v1793 = vpop.f32.mrb[0].mxu0
      %v1794 = vadd.f32 %v1702, %v1793
      %v1795 = vpop.f32.mrb[0].mxu0
      %v1796 = vpop.f32.mrb[0].mxu0
      %v1797 = vadd.f32 %v1702, %v1796
      %v1798 = vpop.f32.mrb[0].mxu0
      %1799 = vmatprep.mubr.bf16.mxu0 0
      %1800 = vmatmul.mubr.bf16.gmra.mrb[0].mxu0 %v1667
      %v1801 = vpop.f32.mrb[0].mxu0
      %v1802 = vadd.f32 %v1702, %v1801
      %v1803 = vpop.f32.mrb[0].mxu0
      %v1804 = vpop.f32.mrb[0].mxu0
      %v1805 = vadd.f32 %v1702, %v1804
      %v1806 = vpop.f32.mrb[0].mxu0
      %1807 = vmatprep.mubr.bf16.mxu0 0
      %1808 = vmatmul.mubr.bf16.gmra.mrb[0].mxu0 %v1668
      %v1809 = vpop.f32.mrb[0].mxu0
      %v1810 = vadd.f32 %v1702, %v1809
      %v1811 = vpop.f32.mrb[0].mxu0
      %v1812 = vpop.f32.mrb[0].mxu0
      %v1813 = vadd.f32 %v1702, %v1812
      %v1814 = vpop.f32.mrb[0].mxu0
      %1815 = vmatprep.mubr.bf16.mxu0 0
      %1816 = vmatmul.mubr.bf16.gmra.mrb[0].mxu0 %v1669
      %v1817 = vpop.f32.mrb[0].mxu0
      %v1818 = vadd.f32 %v1702, %v1817
      %v1819 = vpop.f32.mrb[0].mxu0
      %v1820 = vpop.f32.mrb[0].mxu0
      %v1821 = vadd.f32 %v1702, %v1820
      %v1822 = vpop.f32.mrb[0].mxu0
      %1823 = vmatprep.mubr.bf16.mxu0 0
      %1824 = vmatmul.mubr.bf16.gmra.mrb[0].mxu0 %v1670
      %v1825 = vpop.f32.mrb[0].mxu0
      %v1826 = vadd.f32 %v1702, %v1825
      %v1827 = vpop.f32.mrb[0].mxu0
      %v1828 = vpop.f32.mrb[0].mxu0
      %v1829 = vadd.f32 %v1702, %v1828
      %v1830 = vpop.f32.mrb[0].mxu0
      %1831 = vmatprep.mubr.bf16.mxu0 0
      %1832 = vmatmul.mubr.bf16.gmra.mrb[0].mxu0 %v1671
      %v1833 = vpop.f32.mrb[0].mxu0
      %v1834 = vadd.f32 %v1702, %v1833
      %v1835 = vpop.f32.mrb[0].mxu0
      %v1836 = vpop.f32.mrb[0].mxu0
      %v1837 = vadd.f32 %v1702, %v1836
      %v1838 = vpop.f32.mrb[0].mxu0
      %1839 = vmatprep.mubr.bf16.mxu0 0
      %1840 = vmatmul.mubr.bf16.gmra.mrb[0].mxu0 %v1672
      %v1841 = vpop.f32.mrb[0].mxu0
      %v1842 = vadd.f32 %v1702, %v1841
      %v1843 = vpop.f32.mrb[0].mxu0
      %v1844 = vpop.f32.mrb[0].mxu0
      %v1845 = vadd.f32 %v1702, %v1844
      %v1846 = vpop.f32.mrb[0].mxu0
      %1847 = vmatprep.mubr.bf16.mxu0 0
      %1848 = vmatmul.mubr.bf16.gmra.mrb[0].mxu0 %v1673
      %v1849 = vpop.f32.mrb[0].mxu0
      %v1850 = vadd.f32 %v1702, %v1849
      %v1851 = vpop.f32.mrb[0].mxu0
      %v1852 = vpop.f32.mrb[0].mxu0
      %v1853 = vadd.f32 %v1702, %v1852
      %v1854 = vpop.f32.mrb[0].mxu0
      %1855 = vmatprep.mubr.bf16.mxu0 0
      %1856 = vmatmul.mubr.bf16.gmra.mrb[0].mxu0 %v1674
      %v1857 = vpop.f32.mrb[0].mxu0
      %v1858 = vadd.f32 %v1702, %v1857
      %v1859 = vpop.f32.mrb[0].mxu0
      %v1860 = vpop.f32.mrb[0].mxu0
      %v1861 = vadd.f32 %v1702, %v1860
      %v1862 = vpop.f32.mrb[0].mxu0
      %1863 = vmatprep.mubr.bf16.mxu0 0
      %1864 = vmatmul.mubr.bf16.gmra.mrb[0].mxu0 %v1675
      %v1865 = vpop.f32.mrb[0].mxu0
      %v1866 = vadd.f32 %v1702, %v1865
      %v1867 = vpop.f32.mrb[0].mxu0
      %v1868 = vpop.f32.mrb[0].mxu0
      %v1869 = vadd.f32 %v1702, %v1868
      %v1870 = vpop.f32.mrb[0].mxu0
      %1871 = vmatprep.mubr.bf16.mxu0 0
      %1872 = vmatmul.mubr.bf16.gmra.mrb[0].mxu0 %v1676
      %v1873 = vpop.f32.mrb[0].mxu0
      %v1874 = vadd.f32 %v1702, %v1873
      %v1875 = vpop.f32.mrb[0].mxu0
      %v1876 = vpop.f32.mrb[0].mxu0
      %v1877 = vadd.f32 %v1702, %v1876
      %v1878 = vpop.f32.mrb[0].mxu0
      %1879 = vmatprep.mubr.bf16.mxu0 0
      %1880 = vmatmul.mubr.bf16.gmra.mrb[0].mxu0 %v1677
      %v1881 = vpop.f32.mrb[0].mxu0
      %v1882 = vadd.f32 %v1702, %v1881
      %v1883 = vpop.f32.mrb[0].mxu0
      %v1884 = vpop.f32.mrb[0].mxu0
      %v1885 = vadd.f32 %v1702, %v1884
      %v1886 = vpop.f32.mrb[0].mxu0
      %1887 = vmatprep.mubr.bf16.mxu0 0
      %1888 = vmatmul.mubr.bf16.gmra.mrb[0].mxu0 %v1678
      %v1889 = vpop.f32.mrb[0].mxu0
      %v1890 = vadd.f32 %v1702, %v1889
      %v1891 = vpop.f32.mrb[0].mxu0
      %v1892 = vpop.f32.mrb[0].mxu0
      %v1893 = vadd.f32 %v1702, %v1892
      %v1894 = vpop.f32.mrb[0].mxu0
      %1895 = vmatprep.mubr.bf16.mxu0 0
      %1896 = vmatmul.mubr.bf16.gmra.mrb[0].mxu0 %v1679
      %v1897 = vpop.f32.mrb[0].mxu0
      %v1898 = vadd.f32 %v1702, %v1897
      %v1899 = vpop.f32.mrb[0].mxu0
      %v1900 = vpop.f32.mrb[0].mxu0
      %v1901 = vadd.f32 %v1702, %v1900
      %v1902 = vpop.f32.mrb[0].mxu0
      %1903 = vmatprep.mubr.bf16.mxu0 0
      %1904 = vmatmul.mubr.bf16.gmra.mrb[0].mxu0 %v1680
      %v1905 = vpop.f32.mrb[0].mxu0
      %v1906 = vadd.f32 %v1702, %v1905
      %v1907 = vpop.f32.mrb[0].mxu0
      %v1908 = vpop.f32.mrb[0].mxu0
      %v1909 = vadd.f32 %v1702, %v1908
      %v1910 = vpop.f32.mrb[0].mxu0
      %1911 = vdwg.mxu0
      %v1912 = vmul.f32 %v1786, 0.2
      %v1913 = vmul.f32 %v1789, 0.2
      %v1914 = vmul.f32 %v1794, 0.2
      %v1915 = vmul.f32 %v1797, 0.2
      %v1916 = vmul.f32 %v1802, 0.2
      %v1917 = vmul.f32 %v1805, 0.2
      %v1918 = vmul.f32 %v1810, 0.2
      %v1919 = vmul.f32 %v1813, 0.2
      %v1920 = vmul.f32 %v1818, 0.2
      %v1921 = vmul.f32 %v1821, 0.2
      %v1922 = vmul.f32 %v1826, 0.2
      %v1923 = vmul.f32 %v1829, 0.2
      %v1924 = vmul.f32 %v1834, 0.2
      %v1925 = vmul.f32 %v1837, 0.2
      %v1926 = vmul.f32 %v1842, 0.2
      %v1927 = vmul.f32 %v1845, 0.2
      %v1928 = vmul.f32 %v1850, 0.2
      %v1929 = vmul.f32 %v1853, 0.2
      %v1930 = vmul.f32 %v1858, 0.2
      %v1931 = vmul.f32 %v1861, 0.2
      %v1932 = vmul.f32 %v1866, 0.2
      %v1933 = vmul.f32 %v1869, 0.2
      %v1934 = vmul.f32 %v1874, 0.2
      %v1935 = vmul.f32 %v1877, 0.2
      %v1936 = vmul.f32 %v1882, 0.2
      %v1937 = vmul.f32 %v1885, 0.2
      %v1938 = vmul.f32 %v1890, 0.2
      %v1939 = vmul.f32 %v1893, 0.2
      %v1940 = vmul.f32 %v1898, 0.2
      %v1941 = vmul.f32 %v1901, 0.2
      %v1942 = vmul.f32 %v1906, 0.2
      %v1943 = vmul.f32 %v1909, 0.2
      %v1944 = vmax.f32 %v1786, %v1912
      %v1945 = vmax.f32 %v1789, %v1913
      %v1946 = vmax.f32 %v1794, %v1914
      %v1947 = vmax.f32 %v1797, %v1915
      %v1948 = vmax.f32 %v1802, %v1916
      %v1949 = vmax.f32 %v1805, %v1917
      %v1950 = vmax.f32 %v1810, %v1918
      %v1951 = vmax.f32 %v1813, %v1919
      %v1952 = vmax.f32 %v1818, %v1920
      %v1953 = vmax.f32 %v1821, %v1921
      %v1954 = vmax.f32 %v1826, %v1922
      %v1955 = vmax.f32 %v1829, %v1923
      %v1956 = vmax.f32 %v1834, %v1924
      %v1957 = vmax.f32 %v1837, %v1925
      %v1958 = vmax.f32 %v1842, %v1926
      %v1959 = vmax.f32 %v1845, %v1927
      %v1960 = vmax.f32 %v1850, %v1928
      %v1961 = vmax.f32 %v1853, %v1929
      %v1962 = vmax.f32 %v1858, %v1930
      %v1963 = vmax.f32 %v1861, %v1931
      %v1964 = vmax.f32 %v1866, %v1932
      %v1965 = vmax.f32 %v1869, %v1933
      %v1966 = vmax.f32 %v1874, %v1934
      %v1967 = vmax.f32 %v1877, %v1935
      %v1968 = vmax.f32 %v1882, %v1936
      %v1969 = vmax.f32 %v1885, %v1937
      %v1970 = vmax.f32 %v1890, %v1938
      %v1971 = vmax.f32 %v1893, %v1939
      %v1972 = vmax.f32 %v1898, %v1940
      %v1973 = vmax.f32 %v1901, %v1941
      %v1974 = vmax.f32 %v1906, %v1942
      %v1975 = vmax.f32 %v1909, %v1943
      %v1976 = vld [vmem:[%s5] sm:$0x3]
      %v1977 = vld [vmem:[%s6] sm:$0x1]
      %v1978 = vlaneseq
      %v1979 = vshrl.u32 %v1978, 7
      %v1980 = vsub.s32 0, %v1979
      %v1981 = vrot.slane %v1976, %v1980
      %v1982 = vmul.f32 %v1322, %v1981
      %v1983 = vmul.f32 %v1323, %v1981
      %v1984 = vmul.f32 %v1324, %v1981
      %v1985 = vmul.f32 %v1325, %v1981
      %v1986 = vmul.f32 %v1326, %v1981
      %v1987 = vmul.f32 %v1327, %v1981
      %v1988 = vmul.f32 %v1328, %v1981
      %v1989 = vmul.f32 %v1329, %v1981
      %v1990 = vmul.f32 %v1330, %v1981
      %v1991 = vmul.f32 %v1331, %v1981
      %v1992 = vmul.f32 %v1332, %v1981
      %v1993 = vmul.f32 %v1333, %v1981
      %v1994 = vmul.f32 %v1334, %v1981
      %v1995 = vmul.f32 %v1335, %v1981
      %v1996 = vmul.f32 %v1336, %v1981
      %v1997 = vmul.f32 %v1337, %v1981
      %v1998 = vmul.f32 %v1338, %v1981
      %v1999 = vmul.f32 %v1339, %v1981
      %v2000 = vmul.f32 %v1340, %v1981
      %v2001 = vmul.f32 %v1341, %v1981
      %v2002 = vmul.f32 %v1342, %v1981
      %v2003 = vmul.f32 %v1343, %v1981
      %v2004 = vmul.f32 %v1344, %v1981
      %v2005 = vmul.f32 %v1345, %v1981
      %v2006 = vmul.f32 %v1346, %v1981
      %v2007 = vmul.f32 %v1347, %v1981
      %v2008 = vmul.f32 %v1348, %v1981
      %v2009 = vmul.f32 %v1349, %v1981
      %v2010 = vmul.f32 %v1350, %v1981
      %v2011 = vmul.f32 %v1351, %v1981
      %v2012 = vmul.f32 %v1352, %v1981
      %v2013 = vmul.f32 %v1353, %v1981
      %2014 = vadd.xlane.f32.xlu0 %v1982
      %v2015 = vpop.xlane.xlu0 %2014
      %2016 = vadd.xlane.f32.xlu0 %v1983
      %v2017 = vpop.xlane.xlu0 %2016
      %2018 = vadd.xlane.f32.xlu0 %v1984
      %v2019 = vpop.xlane.xlu0 %2018
      %2020 = vadd.xlane.f32.xlu0 %v1985
      %v2021 = vpop.xlane.xlu0 %2020
      %2022 = vadd.xlane.f32.xlu0 %v1986
      %v2023 = vpop.xlane.xlu0 %2022
      %2024 = vadd.xlane.f32.xlu0 %v1987
      %v2025 = vpop.xlane.xlu0 %2024
      %2026 = vadd.xlane.f32.xlu0 %v1988
      %v2027 = vpop.xlane.xlu0 %2026
      %2028 = vadd.xlane.f32.xlu0 %v1989
      %v2029 = vpop.xlane.xlu0 %2028
      %2030 = vadd.xlane.f32.xlu0 %v1990
      %v2031 = vpop.xlane.xlu0 %2030
      %2032 = vadd.xlane.f32.xlu0 %v1991
      %v2033 = vpop.xlane.xlu0 %2032
      %2034 = vadd.xlane.f32.xlu0 %v1992
      %v2035 = vpop.xlane.xlu0 %2034
      %2036 = vadd.xlane.f32.xlu0 %v1993
      %v2037 = vpop.xlane.xlu0 %2036
      %2038 = vadd.xlane.f32.xlu0 %v1994
      %v2039 = vpop.xlane.xlu0 %2038
      %2040 = vadd.xlane.f32.xlu0 %v1995
      %v2041 = vpop.xlane.xlu0 %2040
      %2042 = vadd.xlane.f32.xlu0 %v1996
      %v2043 = vpop.xlane.xlu0 %2042
      %2044 = vadd.xlane.f32.xlu0 %v1997
      %v2045 = vpop.xlane.xlu0 %2044
      %2046 = vadd.xlane.f32.xlu0 %v1998
      %v2047 = vpop.xlane.xlu0 %2046
      %2048 = vadd.xlane.f32.xlu0 %v1999
      %v2049 = vpop.xlane.xlu0 %2048
      %2050 = vadd.xlane.f32.xlu0 %v2000
      %v2051 = vpop.xlane.xlu0 %2050
      %2052 = vadd.xlane.f32.xlu0 %v2001
      %v2053 = vpop.xlane.xlu0 %2052
      %2054 = vadd.xlane.f32.xlu0 %v2002
      %v2055 = vpop.xlane.xlu0 %2054
      %2056 = vadd.xlane.f32.xlu0 %v2003
      %v2057 = vpop.xlane.xlu0 %2056
      %2058 = vadd.xlane.f32.xlu0 %v2004
      %v2059 = vpop.xlane.xlu0 %2058
      %2060 = vadd.xlane.f32.xlu0 %v2005
      %v2061 = vpop.xlane.xlu0 %2060
      %2062 = vadd.xlane.f32.xlu0 %v2006
      %v2063 = vpop.xlane.xlu0 %2062
      %2064 = vadd.xlane.f32.xlu0 %v2007
      %v2065 = vpop.xlane.xlu0 %2064
      %2066 = vadd.xlane.f32.xlu0 %v2008
      %v2067 = vpop.xlane.xlu0 %2066
      %2068 = vadd.xlane.f32.xlu0 %v2009
      %v2069 = vpop.xlane.xlu0 %2068
      %2070 = vadd.xlane.f32.xlu0 %v2010
      %v2071 = vpop.xlane.xlu0 %2070
      %2072 = vadd.xlane.f32.xlu0 %v2011
      %v2073 = vpop.xlane.xlu0 %2072
      %2074 = vadd.xlane.f32.xlu0 %v2012
      %v2075 = vpop.xlane.xlu0 %2074
      %2076 = vadd.xlane.f32.xlu0 %v2013
      %v2077 = vpop.xlane.xlu0 %2076
      %v2079 = vlaneseq
      %v2080 = vshrl.u32 %v2079, 7
      %v2081 = vsub.s32 0, %v2080
      %v2082 = vrot.slane %v1977, %v2081
      %v2084 = vadd.f32 %v2015, %v2082
      %v2085 = vadd.f32 %v2017, %v2082
      %v2086 = vadd.f32 %v2019, %v2082
      %v2087 = vadd.f32 %v2021, %v2082
      %v2088 = vadd.f32 %v2023, %v2082
      %v2089 = vadd.f32 %v2025, %v2082
      %v2090 = vadd.f32 %v2027, %v2082
      %v2091 = vadd.f32 %v2029, %v2082
      %v2092 = vadd.f32 %v2031, %v2082
      %v2093 = vadd.f32 %v2033, %v2082
      %v2094 = vadd.f32 %v2035, %v2082
      %v2095 = vadd.f32 %v2037, %v2082
      %v2096 = vadd.f32 %v2039, %v2082
      %v2097 = vadd.f32 %v2041, %v2082
      %v2098 = vadd.f32 %v2043, %v2082
      %v2099 = vadd.f32 %v2045, %v2082
      %v2100 = vadd.f32 %v2047, %v2082
      %v2101 = vadd.f32 %v2049, %v2082
      %v2102 = vadd.f32 %v2051, %v2082
      %v2103 = vadd.f32 %v2053, %v2082
      %v2104 = vadd.f32 %v2055, %v2082
      %v2105 = vadd.f32 %v2057, %v2082
      %v2106 = vadd.f32 %v2059, %v2082
      %v2107 = vadd.f32 %v2061, %v2082
      %v2108 = vadd.f32 %v2063, %v2082
      %v2109 = vadd.f32 %v2065, %v2082
      %v2110 = vadd.f32 %v2067, %v2082
      %v2111 = vadd.f32 %v2069, %v2082
      %v2112 = vadd.f32 %v2071, %v2082
      %v2113 = vadd.f32 %v2073, %v2082
      %v2114 = vadd.f32 %v2075, %v2082
      %v2115 = vadd.f32 %v2077, %v2082
      %v2116 = vlaneseq
      %v2117 = vshrl.u32 %v2116, 7
      %v2118 = vsub.s32 1, %v2117
      %v2119 = vrot.slane %v1976, %v2118
      %v2120 = vmul.f32 %v1944, %v2119
      %v2121 = vmul.f32 %v1945, %v2119
      %v2122 = vmul.f32 %v1946, %v2119
      %v2123 = vmul.f32 %v1947, %v2119
      %v2124 = vmul.f32 %v1948, %v2119
      %v2125 = vmul.f32 %v1949, %v2119
      %v2126 = vmul.f32 %v1950, %v2119
      %v2127 = vmul.f32 %v1951, %v2119
      %v2128 = vmul.f32 %v1952, %v2119
      %v2129 = vmul.f32 %v1953, %v2119
      %v2130 = vmul.f32 %v1954, %v2119
      %v2131 = vmul.f32 %v1955, %v2119
      %v2132 = vmul.f32 %v1956, %v2119
      %v2133 = vmul.f32 %v1957, %v2119
      %v2134 = vmul.f32 %v1958, %v2119
      %v2135 = vmul.f32 %v1959, %v2119
      %v2136 = vmul.f32 %v1960, %v2119
      %v2137 = vmul.f32 %v1961, %v2119
      %v2138 = vmul.f32 %v1962, %v2119
      %v2139 = vmul.f32 %v1963, %v2119
      %v2140 = vmul.f32 %v1964, %v2119
      %v2141 = vmul.f32 %v1965, %v2119
      %v2142 = vmul.f32 %v1966, %v2119
      %v2143 = vmul.f32 %v1967, %v2119
      %v2144 = vmul.f32 %v1968, %v2119
      %v2145 = vmul.f32 %v1969, %v2119
      %v2146 = vmul.f32 %v1970, %v2119
      %v2147 = vmul.f32 %v1971, %v2119
      %v2148 = vmul.f32 %v1972, %v2119
      %v2149 = vmul.f32 %v1973, %v2119
      %v2150 = vmul.f32 %v1974, %v2119
      %v2151 = vmul.f32 %v1975, %v2119
      %2152 = vadd.xlane.f32.xlu0 %v2120
      %v2153 = vpop.xlane.xlu0 %2152
      %2154 = vadd.xlane.f32.xlu0 %v2121
      %v2155 = vpop.xlane.xlu0 %2154
      %2156 = vadd.xlane.f32.xlu0 %v2122
      %v2157 = vpop.xlane.xlu0 %2156
      %2158 = vadd.xlane.f32.xlu0 %v2123
      %v2159 = vpop.xlane.xlu0 %2158
      %2160 = vadd.xlane.f32.xlu0 %v2124
      %v2161 = vpop.xlane.xlu0 %2160
      %2162 = vadd.xlane.f32.xlu0 %v2125
      %v2163 = vpop.xlane.xlu0 %2162
      %2164 = vadd.xlane.f32.xlu0 %v2126
      %v2165 = vpop.xlane.xlu0 %2164
      %2166 = vadd.xlane.f32.xlu0 %v2127
      %v2167 = vpop.xlane.xlu0 %2166
      %2168 = vadd.xlane.f32.xlu0 %v2128
      %v2169 = vpop.xlane.xlu0 %2168
      %2170 = vadd.xlane.f32.xlu0 %v2129
      %v2171 = vpop.xlane.xlu0 %2170
      %2172 = vadd.xlane.f32.xlu0 %v2130
      %v2173 = vpop.xlane.xlu0 %2172
      %2174 = vadd.xlane.f32.xlu0 %v2131
      %v2175 = vpop.xlane.xlu0 %2174
      %2176 = vadd.xlane.f32.xlu0 %v2132
      %v2177 = vpop.xlane.xlu0 %2176
      %2178 = vadd.xlane.f32.xlu0 %v2133
      %v2179 = vpop.xlane.xlu0 %2178
      %2180 = vadd.xlane.f32.xlu0 %v2134
      %v2181 = vpop.xlane.xlu0 %2180
      %2182 = vadd.xlane.f32.xlu0 %v2135
      %v2183 = vpop.xlane.xlu0 %2182
      %2184 = vadd.xlane.f32.xlu0 %v2136
      %v2185 = vpop.xlane.xlu0 %2184
      %2186 = vadd.xlane.f32.xlu0 %v2137
      %v2187 = vpop.xlane.xlu0 %2186
      %2188 = vadd.xlane.f32.xlu0 %v2138
      %v2189 = vpop.xlane.xlu0 %2188
      %2190 = vadd.xlane.f32.xlu0 %v2139
      %v2191 = vpop.xlane.xlu0 %2190
      %2192 = vadd.xlane.f32.xlu0 %v2140
      %v2193 = vpop.xlane.xlu0 %2192
      %2194 = vadd.xlane.f32.xlu0 %v2141
      %v2195 = vpop.xlane.xlu0 %2194
      %2196 = vadd.xlane.f32.xlu0 %v2142
      %v2197 = vpop.xlane.xlu0 %2196
      %2198 = vadd.xlane.f32.xlu0 %v2143
      %v2199 = vpop.xlane.xlu0 %2198
      %2200 = vadd.xlane.f32.xlu0 %v2144
      %v2201 = vpop.xlane.xlu0 %2200
      %2202 = vadd.xlane.f32.xlu0 %v2145
      %v2203 = vpop.xlane.xlu0 %2202
      %2204 = vadd.xlane.f32.xlu0 %v2146
      %v2205 = vpop.xlane.xlu0 %2204
      %2206 = vadd.xlane.f32.xlu0 %v2147
      %v2207 = vpop.xlane.xlu0 %2206
      %2208 = vadd.xlane.f32.xlu0 %v2148
      %v2209 = vpop.xlane.xlu0 %2208
      %2210 = vadd.xlane.f32.xlu0 %v2149
      %v2211 = vpop.xlane.xlu0 %2210
      %2212 = vadd.xlane.f32.xlu0 %v2150
      %v2213 = vpop.xlane.xlu0 %2212
      %2214 = vadd.xlane.f32.xlu0 %v2151
      %v2215 = vpop.xlane.xlu0 %2214
      %v2216 = vadd.f32 %v2153, %v2082
      %v2217 = vadd.f32 %v2155, %v2082
      %v2218 = vadd.f32 %v2157, %v2082
      %v2219 = vadd.f32 %v2159, %v2082
      %v2220 = vadd.f32 %v2161, %v2082
      %v2221 = vadd.f32 %v2163, %v2082
      %v2222 = vadd.f32 %v2165, %v2082
      %v2223 = vadd.f32 %v2167, %v2082
      %v2224 = vadd.f32 %v2169, %v2082
      %v2225 = vadd.f32 %v2171, %v2082
      %v2226 = vadd.f32 %v2173, %v2082
      %v2227 = vadd.f32 %v2175, %v2082
      %v2228 = vadd.f32 %v2177, %v2082
      %v2229 = vadd.f32 %v2179, %v2082
      %v2230 = vadd.f32 %v2181, %v2082
      %v2231 = vadd.f32 %v2183, %v2082
      %v2232 = vadd.f32 %v2185, %v2082
      %v2233 = vadd.f32 %v2187, %v2082
      %v2234 = vadd.f32 %v2189, %v2082
      %v2235 = vadd.f32 %v2191, %v2082
      %v2236 = vadd.f32 %v2193, %v2082
      %v2237 = vadd.f32 %v2195, %v2082
      %v2238 = vadd.f32 %v2197, %v2082
      %v2239 = vadd.f32 %v2199, %v2082
      %v2240 = vadd.f32 %v2201, %v2082
      %v2241 = vadd.f32 %v2203, %v2082
      %v2242 = vadd.f32 %v2205, %v2082
      %v2243 = vadd.f32 %v2207, %v2082
      %v2244 = vadd.f32 %v2209, %v2082
      %v2245 = vadd.f32 %v2211, %v2082
      %v2246 = vadd.f32 %v2213, %v2082
      %v2247 = vadd.f32 %v2215, %v2082
      %v2248 = vtanh.pop %v2084
      %v2249 = vtanh.pop %v2085
      %v2250 = vtanh.pop %v2086
      %v2251 = vtanh.pop %v2087
      %v2252 = vtanh.pop %v2088
      %v2253 = vtanh.pop %v2089
      %v2254 = vtanh.pop %v2090
      %v2255 = vtanh.pop %v2091
      %v2256 = vtanh.pop %v2092
      %v2257 = vtanh.pop %v2093
      %v2258 = vtanh.pop %v2094
      %v2259 = vtanh.pop %v2095
      %v2260 = vtanh.pop %v2096
      %v2261 = vtanh.pop %v2097
      %v2262 = vtanh.pop %v2098
      %v2263 = vtanh.pop %v2099
      %v2264 = vtanh.pop %v2100
      %v2265 = vtanh.pop %v2101
      %v2266 = vtanh.pop %v2102
      %v2267 = vtanh.pop %v2103
      %v2268 = vtanh.pop %v2104
      %v2269 = vtanh.pop %v2105
      %v2270 = vtanh.pop %v2106
      %v2271 = vtanh.pop %v2107
      %v2272 = vtanh.pop %v2108
      %v2273 = vtanh.pop %v2109
      %v2274 = vtanh.pop %v2110
      %v2275 = vtanh.pop %v2111
      %v2276 = vtanh.pop %v2112
      %v2277 = vtanh.pop %v2113
      %v2278 = vtanh.pop %v2114
      %v2279 = vtanh.pop %v2115
      %v2280 = vmul.f32 %v2248, 2.0
      %v2281 = vmul.f32 %v2249, 2.0
      %v2282 = vmul.f32 %v2250, 2.0
      %v2283 = vmul.f32 %v2251, 2.0
      %v2284 = vmul.f32 %v2252, 2.0
      %v2285 = vmul.f32 %v2253, 2.0
      %v2286 = vmul.f32 %v2254, 2.0
      %v2287 = vmul.f32 %v2255, 2.0
      %v2288 = vmul.f32 %v2256, 2.0
      %v2289 = vmul.f32 %v2257, 2.0
      %v2290 = vmul.f32 %v2258, 2.0
      %v2291 = vmul.f32 %v2259, 2.0
      %v2292 = vmul.f32 %v2260, 2.0
      %v2293 = vmul.f32 %v2261, 2.0
      %v2294 = vmul.f32 %v2262, 2.0
      %v2295 = vmul.f32 %v2263, 2.0
      %v2296 = vmul.f32 %v2264, 2.0
      %v2297 = vmul.f32 %v2265, 2.0
      %v2298 = vmul.f32 %v2266, 2.0
      %v2299 = vmul.f32 %v2267, 2.0
      %v2300 = vmul.f32 %v2268, 2.0
      %v2301 = vmul.f32 %v2269, 2.0
      %v2302 = vmul.f32 %v2270, 2.0
      %v2303 = vmul.f32 %v2271, 2.0
      %v2304 = vmul.f32 %v2272, 2.0
      %v2305 = vmul.f32 %v2273, 2.0
      %v2306 = vmul.f32 %v2274, 2.0
      %v2307 = vmul.f32 %v2275, 2.0
      %v2308 = vmul.f32 %v2276, 2.0
      %v2309 = vmul.f32 %v2277, 2.0
      %v2310 = vmul.f32 %v2278, 2.0
      %v2311 = vmul.f32 %v2279, 2.0
      %v2312 = vmul.f32 %v2280, 1.442695
      %v2313 = vpow.pop %v2312
      %v2314 = vmul.f32 %v2281, 1.442695
      %v2315 = vpow.pop %v2314
      %v2316 = vmul.f32 %v2282, 1.442695
      %v2317 = vpow.pop %v2316
      %v2318 = vmul.f32 %v2283, 1.442695
      %v2319 = vpow.pop %v2318
      %v2320 = vmul.f32 %v2284, 1.442695
      %v2321 = vpow.pop %v2320
      %v2322 = vmul.f32 %v2285, 1.442695
      %v2323 = vpow.pop %v2322
      %v2324 = vmul.f32 %v2286, 1.442695
      %v2325 = vpow.pop %v2324
      %v2326 = vmul.f32 %v2287, 1.442695
      %v2327 = vpow.pop %v2326
      %v2328 = vmul.f32 %v2288, 1.442695
      %v2329 = vpow.pop %v2328
      %v2330 = vmul.f32 %v2289, 1.442695
      %v2331 = vpow.pop %v2330
      %v2332 = vmul.f32 %v2290, 1.442695
      %v2333 = vpow.pop %v2332
      %v2334 = vmul.f32 %v2291, 1.442695
      %v2335 = vpow.pop %v2334
      %v2336 = vmul.f32 %v2292, 1.442695
      %v2337 = vpow.pop %v2336
      %v2338 = vmul.f32 %v2293, 1.442695
      %v2339 = vpow.pop %v2338
      %v2340 = vmul.f32 %v2294, 1.442695
      %v2341 = vpow.pop %v2340
      %v2342 = vmul.f32 %v2295, 1.442695
      %v2343 = vpow.pop %v2342
      %v2344 = vmul.f32 %v2296, 1.442695
      %v2345 = vpow.pop %v2344
      %v2346 = vmul.f32 %v2297, 1.442695
      %v2347 = vpow.pop %v2346
      %v2348 = vmul.f32 %v2298, 1.442695
      %v2349 = vpow.pop %v2348
      %v2350 = vmul.f32 %v2299, 1.442695
      %v2351 = vpow.pop %v2350
      %v2352 = vmul.f32 %v2300, 1.442695
      %v2353 = vpow.pop %v2352
      %v2354 = vmul.f32 %v2301, 1.442695
      %v2355 = vpow.pop %v2354
      %v2356 = vmul.f32 %v2302, 1.442695
      %v2357 = vpow.pop %v2356
      %v2358 = vmul.f32 %v2303, 1.442695
      %v2359 = vpow.pop %v2358
      %v2360 = vmul.f32 %v2304, 1.442695
      %v2361 = vpow.pop %v2360
      %v2362 = vmul.f32 %v2305, 1.442695
      %v2363 = vpow.pop %v2362
      %v2364 = vmul.f32 %v2306, 1.442695
      %v2365 = vpow.pop %v2364
      %v2366 = vmul.f32 %v2307, 1.442695
      %v2367 = vpow.pop %v2366
      %v2368 = vmul.f32 %v2308, 1.442695
      %v2369 = vpow.pop %v2368
      %v2370 = vmul.f32 %v2309, 1.442695
      %v2371 = vpow.pop %v2370
      %v2372 = vmul.f32 %v2310, 1.442695
      %v2373 = vpow.pop %v2372
      %v2374 = vmul.f32 %v2311, 1.442695
      %v2375 = vpow.pop %v2374
      %2408 = vrot.lane.b32.xlu0 %v2313, 3
      %v2409 = vpop.permute.xlu0 %2408
      %2410 = vrot.lane.b32.xlu0 %v2315, 3
      %v2411 = vpop.permute.xlu0 %2410
      %2412 = vrot.lane.b32.xlu0 %v2317, 3
      %v2413 = vpop.permute.xlu0 %2412
      %2414 = vrot.lane.b32.xlu0 %v2319, 3
      %v2415 = vpop.permute.xlu0 %2414
      %2416 = vrot.lane.b32.xlu0 %v2321, 3
      %v2417 = vpop.permute.xlu0 %2416
      %2418 = vrot.lane.b32.xlu0 %v2323, 3
      %v2419 = vpop.permute.xlu0 %2418
      %2420 = vrot.lane.b32.xlu0 %v2325, 3
      %v2421 = vpop.permute.xlu0 %2420
      %2422 = vrot.lane.b32.xlu0 %v2327, 3
      %v2423 = vpop.permute.xlu0 %2422
      %2424 = vrot.lane.b32.xlu0 %v2329, 3
      %v2425 = vpop.permute.xlu0 %2424
      %2426 = vrot.lane.b32.xlu0 %v2331, 3
      %v2427 = vpop.permute.xlu0 %2426
      %2428 = vrot.lane.b32.xlu0 %v2333, 3
      %v2429 = vpop.permute.xlu0 %2428
      %2430 = vrot.lane.b32.xlu0 %v2335, 3
      %v2431 = vpop.permute.xlu0 %2430
      %2432 = vrot.lane.b32.xlu0 %v2337, 3
      %v2433 = vpop.permute.xlu0 %2432
      %2434 = vrot.lane.b32.xlu0 %v2339, 3
      %v2435 = vpop.permute.xlu0 %2434
      %2436 = vrot.lane.b32.xlu0 %v2341, 3
      %v2437 = vpop.permute.xlu0 %2436
      %2438 = vrot.lane.b32.xlu0 %v2343, 3
      %v2439 = vpop.permute.xlu0 %2438
      %2440 = vrot.lane.b32.xlu0 %v2345, 3
      %v2441 = vpop.permute.xlu0 %2440
      %2442 = vrot.lane.b32.xlu0 %v2347, 3
      %v2443 = vpop.permute.xlu0 %2442
      %2444 = vrot.lane.b32.xlu0 %v2349, 3
      %v2445 = vpop.permute.xlu0 %2444
      %2446 = vrot.lane.b32.xlu0 %v2351, 3
      %v2447 = vpop.permute.xlu0 %2446
      %2448 = vrot.lane.b32.xlu0 %v2353, 3
      %v2449 = vpop.permute.xlu0 %2448
      %2450 = vrot.lane.b32.xlu0 %v2355, 3
      %v2451 = vpop.permute.xlu0 %2450
      %2452 = vrot.lane.b32.xlu0 %v2357, 3
      %v2453 = vpop.permute.xlu0 %2452
      %2454 = vrot.lane.b32.xlu0 %v2359, 3
      %v2455 = vpop.permute.xlu0 %2454
      %2456 = vrot.lane.b32.xlu0 %v2361, 3
      %v2457 = vpop.permute.xlu0 %2456
      %2458 = vrot.lane.b32.xlu0 %v2363, 3
      %v2459 = vpop.permute.xlu0 %2458
      %2460 = vrot.lane.b32.xlu0 %v2365, 3
      %v2461 = vpop.permute.xlu0 %2460
      %2462 = vrot.lane.b32.xlu0 %v2367, 3
      %v2463 = vpop.permute.xlu0 %2462
      %2464 = vrot.lane.b32.xlu0 %v2369, 3
      %v2465 = vpop.permute.xlu0 %2464
      %2466 = vrot.lane.b32.xlu0 %v2371, 3
      %v2467 = vpop.permute.xlu0 %2466
      %2468 = vrot.lane.b32.xlu0 %v2373, 3
      %v2469 = vpop.permute.xlu0 %2468
      %2470 = vrot.lane.b32.xlu0 %v2375, 3
      %v2471 = vpop.permute.xlu0 %2470
      %v2504 = vmul.f32 %v283, %v2409
      %v2505 = vmul.f32 %v284, %v2411
      %v2506 = vmul.f32 %v285, %v2413
      %v2507 = vmul.f32 %v286, %v2415
      %v2508 = vmul.f32 %v287, %v2417
      %v2509 = vmul.f32 %v288, %v2419
      %v2510 = vmul.f32 %v289, %v2421
      %v2511 = vmul.f32 %v290, %v2423
      %v2512 = vmul.f32 %v291, %v2425
      %v2513 = vmul.f32 %v292, %v2427
      %v2514 = vmul.f32 %v293, %v2429
      %v2515 = vmul.f32 %v294, %v2431
      %v2516 = vmul.f32 %v295, %v2433
      %v2517 = vmul.f32 %v296, %v2435
      %v2518 = vmul.f32 %v297, %v2437
      %v2519 = vmul.f32 %v298, %v2439
      %v2520 = vmul.f32 %v299, %v2441
      %v2521 = vmul.f32 %v300, %v2443
      %v2522 = vmul.f32 %v301, %v2445
      %v2523 = vmul.f32 %v302, %v2447
      %v2524 = vmul.f32 %v303, %v2449
      %v2525 = vmul.f32 %v304, %v2451
      %v2526 = vmul.f32 %v305, %v2453
      %v2527 = vmul.f32 %v306, %v2455
      %v2528 = vmul.f32 %v307, %v2457
      %v2529 = vmul.f32 %v308, %v2459
      %v2530 = vmul.f32 %v309, %v2461
      %v2531 = vmul.f32 %v310, %v2463
      %v2532 = vmul.f32 %v311, %v2465
      %v2533 = vmul.f32 %v312, %v2467
      %v2534 = vmul.f32 %v313, %v2469
      %v2535 = vmul.f32 %v314, %v2471
      %2568 = vrot.lane.b32.xlu0 %v2216, 2
      %v2569 = vpop.permute.xlu0 %2568
      %2570 = vrot.lane.b32.xlu0 %v2217, 2
      %v2571 = vpop.permute.xlu0 %2570
      %2572 = vrot.lane.b32.xlu0 %v2218, 2
      %v2573 = vpop.permute.xlu0 %2572
      %2574 = vrot.lane.b32.xlu0 %v2219, 2
      %v2575 = vpop.permute.xlu0 %2574
      %2576 = vrot.lane.b32.xlu0 %v2220, 2
      %v2577 = vpop.permute.xlu0 %2576
      %2578 = vrot.lane.b32.xlu0 %v2221, 2
      %v2579 = vpop.permute.xlu0 %2578
      %2580 = vrot.lane.b32.xlu0 %v2222, 2
      %v2581 = vpop.permute.xlu0 %2580
      %2582 = vrot.lane.b32.xlu0 %v2223, 2
      %v2583 = vpop.permute.xlu0 %2582
      %2584 = vrot.lane.b32.xlu0 %v2224, 2
      %v2585 = vpop.permute.xlu0 %2584
      %2586 = vrot.lane.b32.xlu0 %v2225, 2
      %v2587 = vpop.permute.xlu0 %2586
      %2588 = vrot.lane.b32.xlu0 %v2226, 2
      %v2589 = vpop.permute.xlu0 %2588
      %2590 = vrot.lane.b32.xlu0 %v2227, 2
      %v2591 = vpop.permute.xlu0 %2590
      %2592 = vrot.lane.b32.xlu0 %v2228, 2
      %v2593 = vpop.permute.xlu0 %2592
      %2594 = vrot.lane.b32.xlu0 %v2229, 2
      %v2595 = vpop.permute.xlu0 %2594
      %2596 = vrot.lane.b32.xlu0 %v2230, 2
      %v2597 = vpop.permute.xlu0 %2596
      %2598 = vrot.lane.b32.xlu0 %v2231, 2
      %v2599 = vpop.permute.xlu0 %2598
      %2600 = vrot.lane.b32.xlu0 %v2232, 2
      %v2601 = vpop.permute.xlu0 %2600
      %2602 = vrot.lane.b32.xlu0 %v2233, 2
      %v2603 = vpop.permute.xlu0 %2602
      %2604 = vrot.lane.b32.xlu0 %v2234, 2
      %v2605 = vpop.permute.xlu0 %2604
      %2606 = vrot.lane.b32.xlu0 %v2235, 2
      %v2607 = vpop.permute.xlu0 %2606
      %2608 = vrot.lane.b32.xlu0 %v2236, 2
      %v2609 = vpop.permute.xlu0 %2608
      %2610 = vrot.lane.b32.xlu0 %v2237, 2
      %v2611 = vpop.permute.xlu0 %2610
      %2612 = vrot.lane.b32.xlu0 %v2238, 2
      %v2613 = vpop.permute.xlu0 %2612
      %2614 = vrot.lane.b32.xlu0 %v2239, 2
      %v2615 = vpop.permute.xlu0 %2614
      %2616 = vrot.lane.b32.xlu0 %v2240, 2
      %v2617 = vpop.permute.xlu0 %2616
      %2618 = vrot.lane.b32.xlu0 %v2241, 2
      %v2619 = vpop.permute.xlu0 %2618
      %2620 = vrot.lane.b32.xlu0 %v2242, 2
      %v2621 = vpop.permute.xlu0 %2620
      %2622 = vrot.lane.b32.xlu0 %v2243, 2
      %v2623 = vpop.permute.xlu0 %2622
      %2624 = vrot.lane.b32.xlu0 %v2244, 2
      %v2625 = vpop.permute.xlu0 %2624
      %2626 = vrot.lane.b32.xlu0 %v2245, 2
      %v2627 = vpop.permute.xlu0 %2626
      %2628 = vrot.lane.b32.xlu0 %v2246, 2
      %v2629 = vpop.permute.xlu0 %2628
      %2630 = vrot.lane.b32.xlu0 %v2247, 2
      %v2631 = vpop.permute.xlu0 %2630
      %v2664 = vadd.f32 %v2504, %v2569
      %v2665 = vadd.f32 %v2505, %v2571
      %v2666 = vadd.f32 %v2506, %v2573
      %v2667 = vadd.f32 %v2507, %v2575
      %v2668 = vadd.f32 %v2508, %v2577
      %v2669 = vadd.f32 %v2509, %v2579
      %v2670 = vadd.f32 %v2510, %v2581
      %v2671 = vadd.f32 %v2511, %v2583
      %v2672 = vadd.f32 %v2512, %v2585
      %v2673 = vadd.f32 %v2513, %v2587
      %v2674 = vadd.f32 %v2514, %v2589
      %v2675 = vadd.f32 %v2515, %v2591
      %v2676 = vadd.f32 %v2516, %v2593
      %v2677 = vadd.f32 %v2517, %v2595
      %v2678 = vadd.f32 %v2518, %v2597
      %v2679 = vadd.f32 %v2519, %v2599
      %v2680 = vadd.f32 %v2520, %v2601
      %v2681 = vadd.f32 %v2521, %v2603
      %v2682 = vadd.f32 %v2522, %v2605
      %v2683 = vadd.f32 %v2523, %v2607
      %v2684 = vadd.f32 %v2524, %v2609
      %v2685 = vadd.f32 %v2525, %v2611
      %v2686 = vadd.f32 %v2526, %v2613
      %v2687 = vadd.f32 %v2527, %v2615
      %v2688 = vadd.f32 %v2528, %v2617
      %v2689 = vadd.f32 %v2529, %v2619
      %v2690 = vadd.f32 %v2530, %v2621
      %v2691 = vadd.f32 %v2531, %v2623
      %v2692 = vadd.f32 %v2532, %v2625
      %v2693 = vadd.f32 %v2533, %v2627
      %v2694 = vadd.f32 %v2534, %v2629
      %v2695 = vadd.f32 %v2535, %v2631
      %vm2696 = vcmask 7168
      %2697 = vst.msk [vmem:[%s280] sm:$0xff] %vm2696, %v283
      %2698 = vst.msk [vmem:[%s280 + $0x8] sm:$0xff] %vm2696, %v284
      %2699 = vst.msk [vmem:[%s280 + $0x10] sm:$0xff] %vm2696, %v285
      %2700 = vst.msk [vmem:[%s280 + $0x18] sm:$0xff] %vm2696, %v286
      %2701 = vst.msk [vmem:[%s280 + $0x20] sm:$0xff] %vm2696, %v287
      %2702 = vst.msk [vmem:[%s280 + $0x28] sm:$0xff] %vm2696, %v288
      %2703 = vst.msk [vmem:[%s280 + $0x30] sm:$0xff] %vm2696, %v289
      %2704 = vst.msk [vmem:[%s280 + $0x38] sm:$0xff] %vm2696, %v290
      %2705 = vst.msk [vmem:[%s280 + $0x40] sm:$0xff] %vm2696, %v291
      %2706 = vst.msk [vmem:[%s280 + $0x48] sm:$0xff] %vm2696, %v292
      %2707 = vst.msk [vmem:[%s280 + $0x50] sm:$0xff] %vm2696, %v293
      %2708 = vst.msk [vmem:[%s280 + $0x58] sm:$0xff] %vm2696, %v294
      %2709 = vst.msk [vmem:[%s280 + $0x60] sm:$0xff] %vm2696, %v295
      %2710 = vst.msk [vmem:[%s280 + $0x68] sm:$0xff] %vm2696, %v296
      %2711 = vst.msk [vmem:[%s280 + $0x70] sm:$0xff] %vm2696, %v297
      %2712 = vst.msk [vmem:[%s280 + $0x78] sm:$0xff] %vm2696, %v298
      %2713 = vst.msk [vmem:[%s280 + $0x80] sm:$0xff] %vm2696, %v299
      %2714 = vst.msk [vmem:[%s280 + $0x88] sm:$0xff] %vm2696, %v300
      %2715 = vst.msk [vmem:[%s280 + $0x90] sm:$0xff] %vm2696, %v301
      %2716 = vst.msk [vmem:[%s280 + $0x98] sm:$0xff] %vm2696, %v302
      %2717 = vst.msk [vmem:[%s280 + $0xa0] sm:$0xff] %vm2696, %v303
      %2718 = vst.msk [vmem:[%s280 + $0xa8] sm:$0xff] %vm2696, %v304
      %2719 = vst.msk [vmem:[%s280 + $0xb0] sm:$0xff] %vm2696, %v305
      %2720 = vst.msk [vmem:[%s280 + $0xb8] sm:$0xff] %vm2696, %v306
      %2721 = vst.msk [vmem:[%s280 + $0xc0] sm:$0xff] %vm2696, %v307
      %2722 = vst.msk [vmem:[%s280 + $0xc8] sm:$0xff] %vm2696, %v308
      %2723 = vst.msk [vmem:[%s280 + $0xd0] sm:$0xff] %vm2696, %v309
      %2724 = vst.msk [vmem:[%s280 + $0xd8] sm:$0xff] %vm2696, %v310
      %2725 = vst.msk [vmem:[%s280 + $0xe0] sm:$0xff] %vm2696, %v311
      %2726 = vst.msk [vmem:[%s280 + $0xe8] sm:$0xff] %vm2696, %v312
      %2727 = vst.msk [vmem:[%s280 + $0xf0] sm:$0xff] %vm2696, %v313
      %2728 = vst.msk [vmem:[%s280 + $0xf8] sm:$0xff] %vm2696, %v314
      %2761 = vrot.lane.b32.xlu0 %v2664, 126
      %v2762 = vpop.permute.xlu0 %2761
      %2763 = vrot.lane.b32.xlu0 %v2665, 126
      %v2764 = vpop.permute.xlu0 %2763
      %2765 = vrot.lane.b32.xlu0 %v2666, 126
      %v2766 = vpop.permute.xlu0 %2765
      %2767 = vrot.lane.b32.xlu0 %v2667, 126
      %v2768 = vpop.permute.xlu0 %2767
      %2769 = vrot.lane.b32.xlu0 %v2668, 126
      %v2770 = vpop.permute.xlu0 %2769
      %2771 = vrot.lane.b32.xlu0 %v2669, 126
      %v2772 = vpop.permute.xlu0 %2771
      %2773 = vrot.lane.b32.xlu0 %v2670, 126
      %v2774 = vpop.permute.xlu0 %2773
      %2775 = vrot.lane.b32.xlu0 %v2671, 126
      %v2776 = vpop.permute.xlu0 %2775
      %2777 = vrot.lane.b32.xlu0 %v2672, 126
      %v2778 = vpop.permute.xlu0 %2777
      %2779 = vrot.lane.b32.xlu0 %v2673, 126
      %v2780 = vpop.permute.xlu0 %2779
      %2781 = vrot.lane.b32.xlu0 %v2674, 126
      %v2782 = vpop.permute.xlu0 %2781
      %2783 = vrot.lane.b32.xlu0 %v2675, 126
      %v2784 = vpop.permute.xlu0 %2783
      %2785 = vrot.lane.b32.xlu0 %v2676, 126
      %v2786 = vpop.permute.xlu0 %2785
      %2787 = vrot.lane.b32.xlu0 %v2677, 126
      %v2788 = vpop.permute.xlu0 %2787
      %2789 = vrot.lane.b32.xlu0 %v2678, 126
      %v2790 = vpop.permute.xlu0 %2789
      %2791 = vrot.lane.b32.xlu0 %v2679, 126
      %v2792 = vpop.permute.xlu0 %2791
      %2793 = vrot.lane.b32.xlu0 %v2680, 126
      %v2794 = vpop.permute.xlu0 %2793
      %2795 = vrot.lane.b32.xlu0 %v2681, 126
      %v2796 = vpop.permute.xlu0 %2795
      %2797 = vrot.lane.b32.xlu0 %v2682, 126
      %v2798 = vpop.permute.xlu0 %2797
      %2799 = vrot.lane.b32.xlu0 %v2683, 126
      %v2800 = vpop.permute.xlu0 %2799
      %2801 = vrot.lane.b32.xlu0 %v2684, 126
      %v2802 = vpop.permute.xlu0 %2801
      %2803 = vrot.lane.b32.xlu0 %v2685, 126
      %v2804 = vpop.permute.xlu0 %2803
      %2805 = vrot.lane.b32.xlu0 %v2686, 126
      %v2806 = vpop.permute.xlu0 %2805
      %2807 = vrot.lane.b32.xlu0 %v2687, 126
      %v2808 = vpop.permute.xlu0 %2807
      %2809 = vrot.lane.b32.xlu0 %v2688, 126
      %v2810 = vpop.permute.xlu0 %2809
      %2811 = vrot.lane.b32.xlu0 %v2689, 126
      %v2812 = vpop.permute.xlu0 %2811
      %2813 = vrot.lane.b32.xlu0 %v2690, 126
      %v2814 = vpop.permute.xlu0 %2813
      %2815 = vrot.lane.b32.xlu0 %v2691, 126
      %v2816 = vpop.permute.xlu0 %2815
      %2817 = vrot.lane.b32.xlu0 %v2692, 126
      %v2818 = vpop.permute.xlu0 %2817
      %2819 = vrot.lane.b32.xlu0 %v2693, 126
      %v2820 = vpop.permute.xlu0 %2819
      %2821 = vrot.lane.b32.xlu0 %v2694, 126
      %v2822 = vpop.permute.xlu0 %2821
      %2823 = vrot.lane.b32.xlu0 %v2695, 126
      %v2824 = vpop.permute.xlu0 %2823
      %vm2857 = vcmask 15368
      %2858 = vst.msk [vmem:[%s280] sm:$0xff] %vm2857, %v2762
      %2859 = vst.msk [vmem:[%s280 + $0x8] sm:$0xff] %vm2857, %v2764
      %2860 = vst.msk [vmem:[%s280 + $0x10] sm:$0xff] %vm2857, %v2766
      %2861 = vst.msk [vmem:[%s280 + $0x18] sm:$0xff] %vm2857, %v2768
      %2862 = vst.msk [vmem:[%s280 + $0x20] sm:$0xff] %vm2857, %v2770
      %2863 = vst.msk [vmem:[%s280 + $0x28] sm:$0xff] %vm2857, %v2772
      %2864 = vst.msk [vmem:[%s280 + $0x30] sm:$0xff] %vm2857, %v2774
      %2865 = vst.msk [vmem:[%s280 + $0x38] sm:$0xff] %vm2857, %v2776
      %2866 = vst.msk [vmem:[%s280 + $0x40] sm:$0xff] %vm2857, %v2778
      %2867 = vst.msk [vmem:[%s280 + $0x48] sm:$0xff] %vm2857, %v2780
      %2868 = vst.msk [vmem:[%s280 + $0x50] sm:$0xff] %vm2857, %v2782
      %2869 = vst.msk [vmem:[%s280 + $0x58] sm:$0xff] %vm2857, %v2784
      %2870 = vst.msk [vmem:[%s280 + $0x60] sm:$0xff] %vm2857, %v2786
      %2871 = vst.msk [vmem:[%s280 + $0x68] sm:$0xff] %vm2857, %v2788
      %2872 = vst.msk [vmem:[%s280 + $0x70] sm:$0xff] %vm2857, %v2790
      %2873 = vst.msk [vmem:[%s280 + $0x78] sm:$0xff] %vm2857, %v2792
      %2874 = vst.msk [vmem:[%s280 + $0x80] sm:$0xff] %vm2857, %v2794
      %2875 = vst.msk [vmem:[%s280 + $0x88] sm:$0xff] %vm2857, %v2796
      %2876 = vst.msk [vmem:[%s280 + $0x90] sm:$0xff] %vm2857, %v2798
      %2877 = vst.msk [vmem:[%s280 + $0x98] sm:$0xff] %vm2857, %v2800
      %2878 = vst.msk [vmem:[%s280 + $0xa0] sm:$0xff] %vm2857, %v2802
      %2879 = vst.msk [vmem:[%s280 + $0xa8] sm:$0xff] %vm2857, %v2804
      %2880 = vst.msk [vmem:[%s280 + $0xb0] sm:$0xff] %vm2857, %v2806
      %2881 = vst.msk [vmem:[%s280 + $0xb8] sm:$0xff] %vm2857, %v2808
      %2882 = vst.msk [vmem:[%s280 + $0xc0] sm:$0xff] %vm2857, %v2810
      %2883 = vst.msk [vmem:[%s280 + $0xc8] sm:$0xff] %vm2857, %v2812
      %2884 = vst.msk [vmem:[%s280 + $0xd0] sm:$0xff] %vm2857, %v2814
      %2885 = vst.msk [vmem:[%s280 + $0xd8] sm:$0xff] %vm2857, %v2816
      %2886 = vst.msk [vmem:[%s280 + $0xe0] sm:$0xff] %vm2857, %v2818
      %2887 = vst.msk [vmem:[%s280 + $0xe8] sm:$0xff] %vm2857, %v2820
      %2888 = vst.msk [vmem:[%s280 + $0xf0] sm:$0xff] %vm2857, %v2822
      %2889 = vst.msk [vmem:[%s280 + $0xf8] sm:$0xff] %vm2857, %v2824
      %2922 = vrot.lane.b32.xlu0 %v2280, 2
      %v2923 = vpop.permute.xlu0 %2922
      %2924 = vrot.lane.b32.xlu0 %v2281, 2
      %v2925 = vpop.permute.xlu0 %2924
      %2926 = vrot.lane.b32.xlu0 %v2282, 2
      %v2927 = vpop.permute.xlu0 %2926
      %2928 = vrot.lane.b32.xlu0 %v2283, 2
      %v2929 = vpop.permute.xlu0 %2928
      %2930 = vrot.lane.b32.xlu0 %v2284, 2
      %v2931 = vpop.permute.xlu0 %2930
      %2932 = vrot.lane.b32.xlu0 %v2285, 2
      %v2933 = vpop.permute.xlu0 %2932
      %2934 = vrot.lane.b32.xlu0 %v2286, 2
      %v2935 = vpop.permute.xlu0 %2934
      %2936 = vrot.lane.b32.xlu0 %v2287, 2
      %v2937 = vpop.permute.xlu0 %2936
      %2938 = vrot.lane.b32.xlu0 %v2288, 2
      %v2939 = vpop.permute.xlu0 %2938
      %2940 = vrot.lane.b32.xlu0 %v2289, 2
      %v2941 = vpop.permute.xlu0 %2940
      %2942 = vrot.lane.b32.xlu0 %v2290, 2
      %v2943 = vpop.permute.xlu0 %2942
      %2944 = vrot.lane.b32.xlu0 %v2291, 2
      %v2945 = vpop.permute.xlu0 %2944
      %2946 = vrot.lane.b32.xlu0 %v2292, 2
      %v2947 = vpop.permute.xlu0 %2946
      %2948 = vrot.lane.b32.xlu0 %v2293, 2
      %v2949 = vpop.permute.xlu0 %2948
      %2950 = vrot.lane.b32.xlu0 %v2294, 2
      %v2951 = vpop.permute.xlu0 %2950
      %2952 = vrot.lane.b32.xlu0 %v2295, 2
      %v2953 = vpop.permute.xlu0 %2952
      %2954 = vrot.lane.b32.xlu0 %v2296, 2
      %v2955 = vpop.permute.xlu0 %2954
      %2956 = vrot.lane.b32.xlu0 %v2297, 2
      %v2957 = vpop.permute.xlu0 %2956
      %2958 = vrot.lane.b32.xlu0 %v2298, 2
      %v2959 = vpop.permute.xlu0 %2958
      %2960 = vrot.lane.b32.xlu0 %v2299, 2
      %v2961 = vpop.permute.xlu0 %2960
      %2962 = vrot.lane.b32.xlu0 %v2300, 2
      %v2963 = vpop.permute.xlu0 %2962
      %2964 = vrot.lane.b32.xlu0 %v2301, 2
      %v2965 = vpop.permute.xlu0 %2964
      %2966 = vrot.lane.b32.xlu0 %v2302, 2
      %v2967 = vpop.permute.xlu0 %2966
      %2968 = vrot.lane.b32.xlu0 %v2303, 2
      %v2969 = vpop.permute.xlu0 %2968
      %2970 = vrot.lane.b32.xlu0 %v2304, 2
      %v2971 = vpop.permute.xlu0 %2970
      %2972 = vrot.lane.b32.xlu0 %v2305, 2
      %v2973 = vpop.permute.xlu0 %2972
      %2974 = vrot.lane.b32.xlu0 %v2306, 2
      %v2975 = vpop.permute.xlu0 %2974
      %2976 = vrot.lane.b32.xlu0 %v2307, 2
      %v2977 = vpop.permute.xlu0 %2976
      %2978 = vrot.lane.b32.xlu0 %v2308, 2
      %v2979 = vpop.permute.xlu0 %2978
      %2980 = vrot.lane.b32.xlu0 %v2309, 2
      %v2981 = vpop.permute.xlu0 %2980
      %2982 = vrot.lane.b32.xlu0 %v2310, 2
      %v2983 = vpop.permute.xlu0 %2982
      %2984 = vrot.lane.b32.xlu0 %v2311, 2
      %v2985 = vpop.permute.xlu0 %2984
      %vm3018 = vcmask 23568
      %3019 = vst.msk [vmem:[%s280] sm:$0xff] %vm3018, %v2923
      %3020 = vst.msk [vmem:[%s280 + $0x8] sm:$0xff] %vm3018, %v2925
      %3021 = vst.msk [vmem:[%s280 + $0x10] sm:$0xff] %vm3018, %v2927
      %3022 = vst.msk [vmem:[%s280 + $0x18] sm:$0xff] %vm3018, %v2929
      %3023 = vst.msk [vmem:[%s280 + $0x20] sm:$0xff] %vm3018, %v2931
      %3024 = vst.msk [vmem:[%s280 + $0x28] sm:$0xff] %vm3018, %v2933
      %3025 = vst.msk [vmem:[%s280 + $0x30] sm:$0xff] %vm3018, %v2935
      %3026 = vst.msk [vmem:[%s280 + $0x38] sm:$0xff] %vm3018, %v2937
      %3027 = vst.msk [vmem:[%s280 + $0x40] sm:$0xff] %vm3018, %v2939
      %3028 = vst.msk [vmem:[%s280 + $0x48] sm:$0xff] %vm3018, %v2941
      %3029 = vst.msk [vmem:[%s280 + $0x50] sm:$0xff] %vm3018, %v2943
      %3030 = vst.msk [vmem:[%s280 + $0x58] sm:$0xff] %vm3018, %v2945
      %3031 = vst.msk [vmem:[%s280 + $0x60] sm:$0xff] %vm3018, %v2947
      %3032 = vst.msk [vmem:[%s280 + $0x68] sm:$0xff] %vm3018, %v2949
      %3033 = vst.msk [vmem:[%s280 + $0x70] sm:$0xff] %vm3018, %v2951
      %3034 = vst.msk [vmem:[%s280 + $0x78] sm:$0xff] %vm3018, %v2953
      %3035 = vst.msk [vmem:[%s280 + $0x80] sm:$0xff] %vm3018, %v2955
      %3036 = vst.msk [vmem:[%s280 + $0x88] sm:$0xff] %vm3018, %v2957
      %3037 = vst.msk [vmem:[%s280 + $0x90] sm:$0xff] %vm3018, %v2959
      %3038 = vst.msk [vmem:[%s280 + $0x98] sm:$0xff] %vm3018, %v2961
      %3039 = vst.msk [vmem:[%s280 + $0xa0] sm:$0xff] %vm3018, %v2963
      %3040 = vst.msk [vmem:[%s280 + $0xa8] sm:$0xff] %vm3018, %v2965
      %3041 = vst.msk [vmem:[%s280 + $0xb0] sm:$0xff] %vm3018, %v2967
      %3042 = vst.msk [vmem:[%s280 + $0xb8] sm:$0xff] %vm3018, %v2969
      %3043 = vst.msk [vmem:[%s280 + $0xc0] sm:$0xff] %vm3018, %v2971
      %3044 = vst.msk [vmem:[%s280 + $0xc8] sm:$0xff] %vm3018, %v2973
      %3045 = vst.msk [vmem:[%s280 + $0xd0] sm:$0xff] %vm3018, %v2975
      %3046 = vst.msk [vmem:[%s280 + $0xd8] sm:$0xff] %vm3018, %v2977
      %3047 = vst.msk [vmem:[%s280 + $0xe0] sm:$0xff] %vm3018, %v2979
      %3048 = vst.msk [vmem:[%s280 + $0xe8] sm:$0xff] %vm3018, %v2981
      %3049 = vst.msk [vmem:[%s280 + $0xf0] sm:$0xff] %vm3018, %v2983
      %3050 = vst.msk [vmem:[%s280 + $0xf8] sm:$0xff] %vm3018, %v2985
      %s3051 = smul.u32 32, %s18
      %p3052 = scmp.lt.s32.totalorder %s3051, 63
      %s3053 = scalar_select %p3052, %s3051, 63
      %s3054 = smul.addr %s3053, 8
      %s3055 = scalar_lea.vmem %s7, %s3054
      // Predicated region
      $region49: #{tpu_custom_call.1} parent=47 // pred_check
        %p3056 = pneg %p188
      $region50: #{tpu_custom_call.1} parent=47 // pred_check_branch
        %3058 = sbr.rel (%p3056) target = $region52
      $region51: #{tpu_custom_call.1} parent=47 // pred_region
        %s3059 = smul.u32 32, %s18
      $region52: #{tpu_custom_call.1} parent=47 // pred_fallthru
        _
    $region48: #{tpu_custom_call.1} parent=5 // pred_fallthru
      _
    %p3060 = scmp.le.s32.totalorder 2, %s13
    // Predicated region
    $region53: #{tpu_custom_call.1} parent=5 // pred_check
      %p3061 = pneg %p3060
    $region54: #{tpu_custom_call.1} parent=5 // pred_check_branch
      %3063 = sbr.rel (%p3061) target = $region56
    $region55: #{tpu_custom_call.1} parent=5 // pred_region
      %s3064 = ssub.s32 %s13, 2
      // Predicated region
      $region57: #{tpu_custom_call.1} parent=55 // pred_check
        %p3065 = pneg %p194
      $region58: #{tpu_custom_call.1} parent=55 // pred_check_branch
        %3067 = sbr.rel (%p3065) target = $region60
      $region59: #{tpu_custom_call.1} parent=55 // pred_region
        %s3068 = smul.u32 32, %s19
        %p3069 = scmp.lt.s32.totalorder %s3068, 63
        %s3070 = scalar_select %p3069, %s3068, 63
        %s3071 = smul.addr %s3070, 8
        %s3072 = scalar_lea.vmem %s7, %s3071
      $region60: #{tpu_custom_call.1} parent=55 // pred_fallthru
        _
    $region56: #{tpu_custom_call.1} parent=5 // pred_fallthru
      _
  $region6: #{tpu_custom_call.1} parent=0 // loop_footer
    %s17 = sadd.s32 1, %s13
  $region7: #{tpu_custom_call.1} parent=0 // loop_footer_branch
    %12 = sbr.rel target = $region3
  $region8: #{tpu_custom_call.1} parent=0 // loop_exit
    _

</llo_original>
